<compile_context>
chip_gen: v6e
topology: v6e:2x2x1
jax: 0.10.0
libtpu: 0.0.40
codegen_flags: <defaults>
</compile_context>

<pallas_src>
import functools
import math

import jax
import jax.numpy as jnp
from jax.experimental import pallas as pl
from jax.experimental.pallas import tpu as pltpu

TIMESTEPS = 1000
ALPHA = 30.0          # DDPM(alpha=30)
HIDDEN = 32
TEMB_DIM = 16
COND_CH = 8           # origin xyz(3) + normal(3) + init_cmap(1) + goal_cmap(1)
DP = 8                # feature axis padded 3 -> 8 (sublane-aligned slabs)


# ----------------------------- schedule (plain JAX glue) -----------------------------
def make_schedule_ddpm(timesteps=1000, s=0.008, beta_schedule='cos'):
    if beta_schedule == 'cos':
        x = jnp.linspace(0.0, timesteps, timesteps + 1, dtype=jnp.float32)
        alphas_cumprod = jnp.cos((x / timesteps + s) / (1 + s) * math.pi * 0.5) ** 2
        alphas_cumprod = alphas_cumprod / alphas_cumprod[0]
        betas = 1.0 - alphas_cumprod[1:] / alphas_cumprod[:-1]
        betas = jnp.clip(betas, 0.0, 0.999)
    elif beta_schedule == 'linear':
        betas = jnp.linspace(0.0001, 0.02, timesteps, dtype=jnp.float32)
    else:
        raise Exception('Unsupport beta schedule.')
    alphas = 1.0 - betas
    alphas_cumprod = jnp.cumprod(alphas)
    alphas_cumprod_prev = jnp.concatenate([jnp.ones((1,), betas.dtype), alphas_cumprod[:-1]])
    posterior_variance = betas * (1.0 - alphas_cumprod_prev) / (1.0 - alphas_cumprod)
    return {
        'betas': betas,
        'alphas_cumprod': alphas_cumprod,
        'alphas_cumprod_prev': alphas_cumprod_prev,
        'sqrt_alphas_cumprod': jnp.sqrt(alphas_cumprod),
        'sqrt_one_minus_alphas_cumprod': jnp.sqrt(1.0 - alphas_cumprod),
        'log_one_minus_alphas_cumprod': jnp.log(1.0 - alphas_cumprod),
        'sqrt_recip_alphas_cumprod': jnp.sqrt(1.0 / alphas_cumprod),
        'sqrt_recipm1_alphas_cumprod': jnp.sqrt(1.0 / alphas_cumprod - 1.0),
        'posterior_variance': posterior_variance,
        'posterior_log_variance_clipped': jnp.log(jnp.clip(posterior_variance, 1e-20, None)),
        'posterior_mean_coef1': betas * jnp.sqrt(alphas_cumprod_prev) / (1.0 - alphas_cumprod),
        'posterior_mean_coef2': (1.0 - alphas_cumprod_prev) * jnp.sqrt(alphas) / (1.0 - alphas_cumprod),
    }


# ------------------- single fused kernel: cmap + cond + q_sample + MLP + pred_x0 -------------------
def _fused_ddpm_kernel(scene_ref, obj_ref, origin_ref, x0_ref, noise_ref,
                       coef_ref, bias_base_ref, w1c_ref, w1x_ref, w2_ref, b2_ref,
                       out_ref, *, alpha, n_pts, n_obj):
    f32 = jnp.float32
    B = scene_ref.shape[0]
    H = w1c_ref.shape[0]
    BN = x0_ref.shape[1]

    # small weight tiles, loaded once
    w1c = w1c_ref[...]                                               # (H, 8)
    w1x = w1x_ref[...]                                               # (H, 3)
    bias_base = bias_base_ref[...]                                   # (H, B)

    lane = jax.lax.broadcasted_iota(jnp.int32, (1, BN), 1)           # point-lane index
    c1_row = jnp.zeros((1, BN), f32)
    c2_row = jnp.zeros((1, BN), f32)
    c3_row = jnp.zeros((1, BN), f32)
    c4_row = jnp.zeros((1, BN), f32)
    bias_slab = jnp.zeros((H, BN), f32)

    # Batch is folded into the (single) grid step: B is tiny, per-grid-step overhead
    # would dominate otherwise on single-TC v5e/v6e (and the work is too small for a
    # v7x core split to pay at BN=128).
    for b in range(B):
        # ---- p2p contact map: init+goal object points vs scene, MXU pairwise distance ----
        # d^2 = |s|^2 - 2 s.o + |o|^2 ; obj arrives (3, P) so the RHS is MXU-native.
        # TODO(synk): f32 cancellation near d->0 vs the (s-o)^2 reference formulation;
        # validate tolerance near contact.
        scene = scene_ref[b]                                         # (Ns, 3)
        obj = obj_ref[b]                                             # (3, P) lane-dense
        scene_sq = jnp.sum(scene * scene, axis=-1, keepdims=True)    # (Ns, 1)
        cross = jax.lax.dot_general(scene, obj, (((1,), (0,)), ((), ())),
                                    preferred_element_type=f32)      # (Ns, P)
        obj_sq = obj[0:1] * obj[0:1] + obj[1:2] * obj[1:2] + obj[2:3] * obj[2:3]   # (1, P)
        d2 = jnp.min(scene_sq - 2.0 * cross, axis=0, keepdims=True) + obj_sq       # (1, P)
        d = jnp.sqrt(jnp.maximum(d2, 0.0))
        # TODO(synk): TaskContactDiffusion.p2p_distance source not provided; using the
        # standard normalized contact map 2*sigmoid(-alpha*d) == 1 - 2*(sigmoid(alpha*d)-0.5).
        cmap = 2.0 * jax.nn.sigmoid(-alpha * d)                      # (1, P)  P = 2*n_obj

        # ---- pooled condition features (pseudo-normals + cmap means) ----
        origin = origin_ref[b]                                       # (3, M) feature-major
        o_mean = jnp.mean(origin, axis=-1, keepdims=True)            # (3, 1)
        centered = origin - o_mean
        inv_nrm = 1.0 / (jnp.sqrt(centered[0:1] ** 2 + centered[1:2] ** 2
                                  + centered[2:3] ** 2) + 1e-8)      # (1, M)
        normals = centered * inv_nrm                                 # (3, M)
        n_mean = jnp.mean(normals, axis=-1, keepdims=True)           # (3, 1)

        obj_lane = jax.lax.broadcasted_iota(jnp.int32, cmap.shape, 1)
        is_init = obj_lane < n_obj
        init_mean = jnp.sum(jnp.where(is_init, cmap, 0.0), axis=-1, keepdims=True) / n_obj  # (1,1)
        goal_mean = jnp.sum(jnp.where(is_init, 0.0, cmap), axis=-1, keepdims=True) / n_obj  # (1,1)

        # bias_b (H, 1) = W1c^T . mean(cond) + (temb @ W1t + b1)^T[:, b]
        # K=8 contraction done as 8 VPU broadcast-FMAs (no degenerate N=1 MXU matmul).
        bias_b = bias_base[:, b:b + 1]
        for k in range(3):
            bias_b = bias_b + w1c[:, k:k + 1] * o_mean[k:k + 1, :]
            bias_b = bias_b + w1c[:, 3 + k:4 + k] * n_mean[k:k + 1, :]
        bias_b = bias_b + w1c[:, 6:7] * init_mean + w1c[:, 7:8] * goal_mean

        # scatter per-batch coefficients / bias onto this batch's lanes
        in_b = (lane >= b * n_pts) & (lane < (b + 1) * n_pts)        # (1, BN)
        bias_slab = jnp.where(in_b, bias_b, bias_slab)
        c1_row = jnp.where(in_b, coef_ref[0, b], c1_row)
        c2_row = jnp.where(in_b, coef_ref[1, b], c2_row)
        c3_row = jnp.where(in_b, coef_ref[2, b], c3_row)
        c4_row = jnp.where(in_b, coef_ref[3, b], c4_row)

    # ---- q_sample + eps-model MLP + pred_x0 over all B*N lanes at once ----
    x_t = c1_row * x0_ref[...] + c2_row * noise_ref[...]             # (DP, BN)
    h = bias_slab
    for k in range(3):   # K=3 first layer as VPU outer-product FMAs (MXU would be <2% utilized)
        h = h + w1x[:, k:k + 1] * x_t[k:k + 1, :]
    h = jnp.maximum(h, 0.0)                                          # (H, BN)
    eps = jnp.dot(w2_ref[...], h, preferred_element_type=f32) + b2_ref[...]   # (DP, BN)
    px0 = c3_row * x_t - c4_row * eps                                # (DP, BN)

    out_ref[0] = eps                                                 # unmasked (8,128)-aligned store
    out_ref[1] = px0


# -------------------------------------- glue --------------------------------------
def timestep_embedding(t, dim):
    half = dim // 2
    freqs = jnp.exp(-math.log(10000.0) * jnp.arange(half, dtype=jnp.float32) / half)
    args = t.astype(jnp.float32)[:, None] * freqs[None, :]
    return jnp.concatenate([jnp.sin(args), jnp.cos(args)], axis=-1)


def init_eps_params(key):
    k1, k2, k3, k4 = jax.random.split(key, 4)
    s = 0.1
    return {
        'w1x': s * jax.random.normal(k1, (3, HIDDEN), jnp.float32),
        'w1c': s * jax.random.normal(k2, (COND_CH, HIDDEN), jnp.float32),
        'w1t': s * jax.random.normal(k3, (TEMB_DIM, HIDDEN), jnp.float32),
        'b1': jnp.zeros((1, HIDDEN), jnp.float32),
        'w2': s * jax.random.normal(k4, (HIDDEN, 3), jnp.float32),
        'b2': jnp.zeros((1, 3), jnp.float32),
    }


def ddpm_forward(params, schedule, data, key, timesteps=TIMESTEPS, alpha=ALPHA):
    """DDPM.forward: returns (pred_noise, pred_x0, noise)."""
    x0 = data['x']
    B, N, D = x0.shape
    key_t, key_n = jax.random.split(key)
    ts = jax.random.randint(key_t, (B,), 0, timesteps)
    noise = jax.random.normal(key_n, x0.shape, dtype=x0.dtype)

    # per-batch diffusion coefficients -> tiny (4, B) SMEM array (broadcast in-kernel)
    coefs = jnp.stack([
        schedule['sqrt_alphas_cumprod'][ts],
        schedule['sqrt_one_minus_alphas_cumprod'][ts],
        schedule['sqrt_recip_alphas_cumprod'][ts],
        schedule['sqrt_recipm1_alphas_cumprod'][ts],
    ], axis=0).astype(jnp.float32)                                        # (4, B)

    # time-embedding part of the eps-model bias (cond part is computed in-kernel)
    temb = timestep_embedding(ts, TEMB_DIM)                               # (B, 16)
    bias_base = (temb @ params['w1t'] + params['b1']).T.astype(jnp.float32)   # (H, B)

    # object clouds: init+goal stacked on the point axis, feature-major (B, 3, 2M)
    M = data['init_obj_verts'].shape[1]
    Ns = data['scene_pcd'].shape[1]
    obj_pair = jnp.concatenate([data['init_obj_verts'][:, :, :3],
                                data['goal_obj_verts'][:, :, :3]], axis=1)
    obj_fm = jnp.transpose(obj_pair, (0, 2, 1)).astype(jnp.float32)       # (B, 3, 2M)
    origin_fm = jnp.transpose(data['origin_obj_verts'], (0, 2, 1)).astype(jnp.float32)  # (B, 3, M)
    scene = data['scene_pcd'].astype(jnp.float32)                         # (B, Ns, 3)
    P = 2 * M
    # TODO(synk): pytorch3d.ops.estimate_pointcloud_normals (kNN + 3x3 eigendecomposition)
    # has no clean Pallas equivalent; the kernel uses unit directions from the centroid.

    # feature-major, lane-dense, sublane/lane-padded slabs (layout plumbing only)
    BN = B * N
    BN_pad = pl.cdiv(BN, 128) * 128
    def to_slab(a):
        s = a.reshape(BN, D).T.astype(jnp.float32)                        # (D, BN)
        return jnp.pad(s, ((0, DP - D), (0, BN_pad - BN)))                # (8, BN_pad)
    x0_p = to_slab(x0)
    noise_p = to_slab(noise)

    H = HIDDEN
    w1c_T = params['w1c'].T.astype(jnp.float32)                           # (H, 8)
    w1x_T = params['w1x'].T.astype(jnp.float32)                           # (H, 3)
    w2p_T = jnp.pad(params['w2'].T.astype(jnp.float32), ((0, DP - D), (0, 0)))       # (8, H)
    b2_p = jnp.pad(params['b2'].reshape(D, 1).astype(jnp.float32), ((0, DP - D), (0, 0)))  # (8, 1)

    kernel = functools.partial(_fused_ddpm_kernel, alpha=float(alpha), n_pts=N, n_obj=M)
    out = pl.pallas_call(
        kernel,
        out_shape=jax.ShapeDtypeStruct((2, DP, BN_pad), jnp.float32),
        grid=(1,),
        in_specs=[
            pl.BlockSpec((B, Ns, 3), lambda i: (0, 0, 0)),                # scene (Ns,3): MXU-native LHS
            pl.BlockSpec((B, 3, P), lambda i: (0, 0, 0)),                 # init+goal obj, (3,P) RHS
            pl.BlockSpec((B, 3, M), lambda i: (0, 0, 0)),                 # origin obj, feature-major
            pl.BlockSpec((DP, BN_pad), lambda i: (0, 0)),                 # x0 slab
            pl.BlockSpec((DP, BN_pad), lambda i: (0, 0)),                 # noise slab
            pl.BlockSpec(memory_space=pltpu.MemorySpace.SMEM),            # coefs (4, B) scalars
            pl.BlockSpec((H, B), lambda i: (0, 0)),                       # temb bias (H, B)
            pl.BlockSpec((H, COND_CH), lambda i: (0, 0)),                 # W1c^T
            pl.BlockSpec((H, D), lambda i: (0, 0)),                       # W1x^T
            pl.BlockSpec((DP, H), lambda i: (0, 0)),                      # W2^T (padded to 8 rows)
            pl.BlockSpec((DP, 1), lambda i: (0, 0)),                      # b2 (padded to 8 rows)
        ],
        out_specs=pl.BlockSpec((2, DP, BN_pad), lambda i: (0, 0, 0)),
        compiler_params=pltpu.CompilerParams(dimension_semantics=("arbitrary",)),
    )(scene, obj_fm, origin_fm, x0_p, noise_p, coefs, bias_base, w1c_T, w1x_T, w2p_T, b2_p)

    pred_noise = out[0, :D, :BN].T.reshape(B, N, D).astype(x0.dtype)
    pred_x0 = out[1, :D, :BN].T.reshape(B, N, D).astype(x0.dtype)
    return pred_noise, pred_x0, noise


if __name__ == "__main__":
    key = jax.random.PRNGKey(0)
    kx, ks, ki, kg, ko, kp, kfwd = jax.random.split(key, 7)

    B, M, Ns, D = 2, 64, 256, 3
    data = {
        'x': jax.random.normal(kx, (B, M, D), jnp.float32),
        'scene_pcd': jax.random.normal(ks, (B, Ns, 3), jnp.float32),
        'init_obj_verts': jax.random.normal(ki, (B, M, 3), jnp.float32),
        'goal_obj_verts': jax.random.normal(kg, (B, M, 3), jnp.float32),
        'origin_obj_verts': jax.random.normal(ko, (B, M, 3), jnp.float32),
    }
    params = init_eps_params(kp)
    schedule = make_schedule_ddpm(TIMESTEPS, beta_schedule='cos')

    fwd = jax.jit(functools.partial(ddpm_forward, timesteps=TIMESTEPS, alpha=ALPHA))
    pred_noise, pred_x0, noise = fwd(params, schedule, data, kfwd)
    jax.block_until_ready((pred_noise, pred_x0, noise))

    assert pred_noise.shape == data['x'].shape
    assert pred_x0.shape == data['x'].shape
    assert noise.shape == data['x'].shape
    assert bool(jnp.all(jnp.isfinite(pred_noise))) and bool(jnp.all(jnp.isfinite(pred_x0)))
    print("KERNEL_OK")
</pallas_src>

<mosaic_0001>
module attributes {stable_mosaic.version = 11 : i64} {
  func.func @_fused_ddpm_kernel(%arg0: i32, %arg1: memref<2x256x3xf32, #tpu.memory_space<vmem>>, %arg2: memref<2x3x128xf32, #tpu.memory_space<vmem>>, %arg3: memref<2x3x64xf32, #tpu.memory_space<vmem>>, %arg4: memref<8x128xf32, #tpu.memory_space<vmem>>, %arg5: memref<8x128xf32, #tpu.memory_space<vmem>>, %arg6: memref<4x2xf32, #tpu.memory_space<smem>>, %arg7: memref<32x2xf32, #tpu.memory_space<vmem>>, %arg8: memref<32x8xf32, #tpu.memory_space<vmem>>, %arg9: memref<32x3xf32, #tpu.memory_space<vmem>>, %arg10: memref<8x32xf32, #tpu.memory_space<vmem>>, %arg11: memref<8x1xf32, #tpu.memory_space<vmem>>, %arg12: memref<2x8x128xf32, #tpu.memory_space<vmem>>) attributes {dimension_semantics = [#tpu.dimension_semantics<arbitrary>], iteration_bounds = array<i64: 1>, scalar_prefetch = 0 : i64, scratch_operands = 0 : i64, tpu.core_type = #tpu.core_type<tc>, window_params = [{pipeline_mode = #tpu.pipeline_mode<synchronous>, transform_indices = @transform_0, window_bounds = array<i64: 2, 256, 3>}, {pipeline_mode = #tpu.pipeline_mode<synchronous>, transform_indices = @transform_1, window_bounds = array<i64: 2, 3, 128>}, {pipeline_mode = #tpu.pipeline_mode<synchronous>, transform_indices = @transform_2, window_bounds = array<i64: 2, 3, 64>}, {pipeline_mode = #tpu.pipeline_mode<synchronous>, transform_indices = @transform_3, window_bounds = array<i64: 8, 128>}, {pipeline_mode = #tpu.pipeline_mode<synchronous>, transform_indices = @transform_4, window_bounds = array<i64: 8, 128>}, {transform_indices = @transform_5, window_bounds = array<i64: 4, 2>}, {pipeline_mode = #tpu.pipeline_mode<synchronous>, transform_indices = @transform_6, window_bounds = array<i64: 32, 2>}, {pipeline_mode = #tpu.pipeline_mode<synchronous>, transform_indices = @transform_7, window_bounds = array<i64: 32, 8>}, {pipeline_mode = #tpu.pipeline_mode<synchronous>, transform_indices = @transform_8, window_bounds = array<i64: 32, 3>}, {pipeline_mode = #tpu.pipeline_mode<synchronous>, transform_indices = @transform_9, window_bounds = array<i64: 8, 32>}, {pipeline_mode = #tpu.pipeline_mode<synchronous>, transform_indices = @transform_10, window_bounds = array<i64: 8, 1>}, {pipeline_mode = #tpu.pipeline_mode<synchronous>, transform_indices = @transform_11, window_bounds = array<i64: 2, 8, 128>}]} {
    %c0 = arith.constant 0 : index
    %c0_0 = arith.constant 0 : index
    %0 = vector.load %arg8[%c0, %c0_0] : memref<32x8xf32, #tpu.memory_space<vmem>>, vector<32x8xf32>
    %c0_1 = arith.constant 0 : index
    %c0_2 = arith.constant 0 : index
    %1 = vector.load %arg9[%c0_1, %c0_2] : memref<32x3xf32, #tpu.memory_space<vmem>>, vector<32x3xf32>
    %c0_3 = arith.constant 0 : index
    %c0_4 = arith.constant 0 : index
    %2 = vector.load %arg7[%c0_3, %c0_4] : memref<32x2xf32, #tpu.memory_space<vmem>>, vector<32x2xf32>
    %3 = tpu.iota {dimensions = array<i32: 1>} : vector<1x128xi32>
    %cst = arith.constant 0.000000e+00 : f32
    %4 = vector.broadcast %cst : f32 to vector<1x128xf32>
    %cst_5 = arith.constant 0.000000e+00 : f32
    %5 = vector.broadcast %cst_5 : f32 to vector<1x128xf32>
    %cst_6 = arith.constant 0.000000e+00 : f32
    %6 = vector.broadcast %cst_6 : f32 to vector<1x128xf32>
    %cst_7 = arith.constant 0.000000e+00 : f32
    %7 = vector.broadcast %cst_7 : f32 to vector<1x128xf32>
    %cst_8 = arith.constant 0.000000e+00 : f32
    %8 = vector.broadcast %cst_8 : f32 to vector<32x128xf32>
    %c0_9 = arith.constant 0 : index
    %c0_10 = arith.constant 0 : index
    %c0_11 = arith.constant 0 : index
    %9 = vector.load %arg1[%c0_9, %c0_10, %c0_11] : memref<2x256x3xf32, #tpu.memory_space<vmem>>, vector<1x256x3xf32>
    %10 = vector.shape_cast %9 : vector<1x256x3xf32> to vector<256x3xf32>
    %c0_12 = arith.constant 0 : index
    %c0_13 = arith.constant 0 : index
    %c0_14 = arith.constant 0 : index
    %11 = vector.load %arg2[%c0_12, %c0_13, %c0_14] : memref<2x3x128xf32, #tpu.memory_space<vmem>>, vector<1x3x128xf32>
    %12 = vector.shape_cast %11 : vector<1x3x128xf32> to vector<3x128xf32>
    %13 = arith.mulf %10, %10 : vector<256x3xf32>
    %cst_15 = arith.constant dense<0.000000e+00> : vector<256xf32>
    %14 = vector.multi_reduction <add>, %13, %cst_15 [1] : vector<256x3xf32> to vector<256xf32>
    %15 = vector.shape_cast %14 : vector<256xf32> to vector<256x1xf32>
    %cst_16 = arith.constant dense<0.000000e+00> : vector<256x128xf32>
    %16 = tpu.matmul %10, %12, %cst_16 {dimension_numbers = #tpu.dot_dimension_numbers<[1], [0], [0], [1], [0, 0, 1, 1], [], []>} : vector<256x3xf32>, vector<3x128xf32>, vector<256x128xf32> -> vector<256x128xf32>
    %17 = vector.extract_strided_slice %12 {offsets = [0, 0], sizes = [1, 128], strides = [1, 1]} : vector<3x128xf32> to vector<1x128xf32>
    %18 = vector.extract_strided_slice %12 {offsets = [0, 0], sizes = [1, 128], strides = [1, 1]} : vector<3x128xf32> to vector<1x128xf32>
    %19 = arith.mulf %17, %18 : vector<1x128xf32>
    %20 = vector.extract_strided_slice %12 {offsets = [1, 0], sizes = [1, 128], strides = [1, 1]} : vector<3x128xf32> to vector<1x128xf32>
    %21 = vector.extract_strided_slice %12 {offsets = [1, 0], sizes = [1, 128], strides = [1, 1]} : vector<3x128xf32> to vector<1x128xf32>
    %22 = arith.mulf %20, %21 : vector<1x128xf32>
    %23 = arith.addf %19, %22 : vector<1x128xf32>
    %24 = vector.extract_strided_slice %12 {offsets = [2, 0], sizes = [1, 128], strides = [1, 1]} : vector<3x128xf32> to vector<1x128xf32>
    %25 = vector.extract_strided_slice %12 {offsets = [2, 0], sizes = [1, 128], strides = [1, 1]} : vector<3x128xf32> to vector<1x128xf32>
    %26 = arith.mulf %24, %25 : vector<1x128xf32>
    %27 = arith.addf %23, %26 : vector<1x128xf32>
    %cst_17 = arith.constant 2.000000e+00 : f32
    %28 = vector.broadcast %cst_17 : f32 to vector<256x128xf32>
    %29 = arith.mulf %28, %16 : vector<256x128xf32>
    %30 = vector.broadcast %15 : vector<256x1xf32> to vector<256x128xf32>
    %31 = arith.subf %30, %29 : vector<256x128xf32>
    %cst_18 = arith.constant dense<0x7F800000> : vector<128xf32>
    %32 = vector.multi_reduction <minimumf>, %31, %cst_18 [0] : vector<256x128xf32> to vector<128xf32>
    %33 = vector.shape_cast %32 : vector<128xf32> to vector<1x128xf32>
    %34 = arith.addf %33, %27 : vector<1x128xf32>
    %cst_19 = arith.constant 0.000000e+00 : f32
    %35 = vector.broadcast %cst_19 : f32 to vector<1x128xf32>
    %36 = arith.maximumf %34, %35 : vector<1x128xf32>
    %37 = math.sqrt %36 : vector<1x128xf32>
    %cst_20 = arith.constant -3.000000e+01 : f32
    %38 = vector.broadcast %cst_20 : f32 to vector<1x128xf32>
    %39 = arith.mulf %38, %37 : vector<1x128xf32>
    %40 = arith.negf %39 : vector<1x128xf32>
    %41 = math.exp %40 : vector<1x128xf32>
    %cst_21 = arith.constant 1.000000e+00 : f32
    %42 = vector.broadcast %cst_21 : f32 to vector<1x128xf32>
    %43 = arith.addf %42, %41 : vector<1x128xf32>
    %44 = arith.divf %42, %43 : vector<1x128xf32>
    %cst_22 = arith.constant 2.000000e+00 : f32
    %45 = vector.broadcast %cst_22 : f32 to vector<1x128xf32>
    %46 = arith.mulf %45, %44 : vector<1x128xf32>
    %c0_23 = arith.constant 0 : index
    %c0_24 = arith.constant 0 : index
    %c0_25 = arith.constant 0 : index
    %47 = vector.load %arg3[%c0_23, %c0_24, %c0_25] : memref<2x3x64xf32, #tpu.memory_space<vmem>>, vector<1x3x64xf32>
    %48 = vector.shape_cast %47 : vector<1x3x64xf32> to vector<3x64xf32>
    %cst_26 = arith.constant dense<0.000000e+00> : vector<3xf32>
    %49 = vector.multi_reduction <add>, %48, %cst_26 [1] : vector<3x64xf32> to vector<3xf32>
    %50 = vector.shape_cast %49 : vector<3xf32> to vector<3x1xf32>
    %cst_27 = arith.constant 6.400000e+01 : f32
    %51 = vector.broadcast %cst_27 : f32 to vector<3x1xf32>
    %52 = arith.divf %50, %51 : vector<3x1xf32>
    %53 = vector.broadcast %52 : vector<3x1xf32> to vector<3x64xf32>
    %54 = arith.subf %48, %53 : vector<3x64xf32>
    %55 = vector.extract_strided_slice %54 {offsets = [0, 0], sizes = [1, 64], strides = [1, 1]} : vector<3x64xf32> to vector<1x64xf32>
    %56 = arith.mulf %55, %55 : vector<1x64xf32>
    %57 = vector.extract_strided_slice %54 {offsets = [1, 0], sizes = [1, 64], strides = [1, 1]} : vector<3x64xf32> to vector<1x64xf32>
    %58 = arith.mulf %57, %57 : vector<1x64xf32>
    %59 = arith.addf %56, %58 : vector<1x64xf32>
    %60 = vector.extract_strided_slice %54 {offsets = [2, 0], sizes = [1, 64], strides = [1, 1]} : vector<3x64xf32> to vector<1x64xf32>
    %61 = arith.mulf %60, %60 : vector<1x64xf32>
    %62 = arith.addf %59, %61 : vector<1x64xf32>
    %63 = math.sqrt %62 : vector<1x64xf32>
    %cst_28 = arith.constant 9.99999993E-9 : f32
    %64 = vector.broadcast %cst_28 : f32 to vector<1x64xf32>
    %65 = arith.addf %63, %64 : vector<1x64xf32>
    %cst_29 = arith.constant 1.000000e+00 : f32
    %66 = vector.broadcast %cst_29 : f32 to vector<1x64xf32>
    %67 = arith.divf %66, %65 : vector<1x64xf32>
    %68 = vector.broadcast %67 : vector<1x64xf32> to vector<3x64xf32>
    %69 = arith.mulf %54, %68 : vector<3x64xf32>
    %cst_30 = arith.constant dense<0.000000e+00> : vector<3xf32>
    %70 = vector.multi_reduction <add>, %69, %cst_30 [1] : vector<3x64xf32> to vector<3xf32>
    %71 = vector.shape_cast %70 : vector<3xf32> to vector<3x1xf32>
    %cst_31 = arith.constant 6.400000e+01 : f32
    %72 = vector.broadcast %cst_31 : f32 to vector<3x1xf32>
    %73 = arith.divf %71, %72 : vector<3x1xf32>
    %74 = tpu.iota {dimensions = array<i32: 1>} : vector<1x128xi32>
    %c64_i32 = arith.constant 64 : i32
    %75 = vector.broadcast %c64_i32 : i32 to vector<1x128xi32>
    %76 = arith.cmpi slt, %74, %75 : vector<1x128xi32>
    %cst_32 = arith.constant 0.000000e+00 : f32
    %77 = vector.broadcast %cst_32 : f32 to vector<1x128xf32>
    %78 = arith.select %76, %46, %77 : vector<1x128xi1>, vector<1x128xf32>
    %cst_33 = arith.constant dense<0.000000e+00> : vector<1xf32>
    %79 = vector.multi_reduction <add>, %78, %cst_33 [1] : vector<1x128xf32> to vector<1xf32>
    %80 = vector.shape_cast %79 : vector<1xf32> to vector<1x1xf32>
    %cst_34 = arith.constant 6.400000e+01 : f32
    %81 = vector.broadcast %cst_34 : f32 to vector<1x1xf32>
    %82 = arith.divf %80, %81 : vector<1x1xf32>
    %cst_35 = arith.constant 0.000000e+00 : f32
    %83 = vector.broadcast %cst_35 : f32 to vector<1x128xf32>
    %84 = arith.select %76, %83, %46 : vector<1x128xi1>, vector<1x128xf32>
    %cst_36 = arith.constant dense<0.000000e+00> : vector<1xf32>
    %85 = vector.multi_reduction <add>, %84, %cst_36 [1] : vector<1x128xf32> to vector<1xf32>
    %86 = vector.shape_cast %85 : vector<1xf32> to vector<1x1xf32>
    %cst_37 = arith.constant 6.400000e+01 : f32
    %87 = vector.broadcast %cst_37 : f32 to vector<1x1xf32>
    %88 = arith.divf %86, %87 : vector<1x1xf32>
    %89 = vector.extract_strided_slice %2 {offsets = [0, 0], sizes = [32, 1], strides = [1, 1]} : vector<32x2xf32> to vector<32x1xf32>
    %90 = vector.extract_strided_slice %0 {offsets = [0, 0], sizes = [32, 1], strides = [1, 1]} : vector<32x8xf32> to vector<32x1xf32>
    %91 = vector.extract_strided_slice %52 {offsets = [0, 0], sizes = [1, 1], strides = [1, 1]} : vector<3x1xf32> to vector<1x1xf32>
    %92 = vector.broadcast %91 : vector<1x1xf32> to vector<32x1xf32>
    %93 = arith.mulf %90, %92 : vector<32x1xf32>
    %94 = arith.addf %89, %93 : vector<32x1xf32>
    %95 = vector.extract_strided_slice %0 {offsets = [0, 3], sizes = [32, 1], strides = [1, 1]} : vector<32x8xf32> to vector<32x1xf32>
    %96 = vector.extract_strided_slice %73 {offsets = [0, 0], sizes = [1, 1], strides = [1, 1]} : vector<3x1xf32> to vector<1x1xf32>
    %97 = vector.broadcast %96 : vector<1x1xf32> to vector<32x1xf32>
    %98 = arith.mulf %95, %97 : vector<32x1xf32>
    %99 = arith.addf %94, %98 : vector<32x1xf32>
    %100 = vector.extract_strided_slice %0 {offsets = [0, 1], sizes = [32, 1], strides = [1, 1]} : vector<32x8xf32> to vector<32x1xf32>
    %101 = vector.extract_strided_slice %52 {offsets = [1, 0], sizes = [1, 1], strides = [1, 1]} : vector<3x1xf32> to vector<1x1xf32>
    %102 = vector.broadcast %101 : vector<1x1xf32> to vector<32x1xf32>
    %103 = arith.mulf %100, %102 : vector<32x1xf32>
    %104 = arith.addf %99, %103 : vector<32x1xf32>
    %105 = vector.extract_strided_slice %0 {offsets = [0, 4], sizes = [32, 1], strides = [1, 1]} : vector<32x8xf32> to vector<32x1xf32>
    %106 = vector.extract_strided_slice %73 {offsets = [1, 0], sizes = [1, 1], strides = [1, 1]} : vector<3x1xf32> to vector<1x1xf32>
    %107 = vector.broadcast %106 : vector<1x1xf32> to vector<32x1xf32>
    %108 = arith.mulf %105, %107 : vector<32x1xf32>
    %109 = arith.addf %104, %108 : vector<32x1xf32>
    %110 = vector.extract_strided_slice %0 {offsets = [0, 2], sizes = [32, 1], strides = [1, 1]} : vector<32x8xf32> to vector<32x1xf32>
    %111 = vector.extract_strided_slice %52 {offsets = [2, 0], sizes = [1, 1], strides = [1, 1]} : vector<3x1xf32> to vector<1x1xf32>
    %112 = vector.broadcast %111 : vector<1x1xf32> to vector<32x1xf32>
    %113 = arith.mulf %110, %112 : vector<32x1xf32>
    %114 = arith.addf %109, %113 : vector<32x1xf32>
    %115 = vector.extract_strided_slice %0 {offsets = [0, 5], sizes = [32, 1], strides = [1, 1]} : vector<32x8xf32> to vector<32x1xf32>
    %116 = vector.extract_strided_slice %73 {offsets = [2, 0], sizes = [1, 1], strides = [1, 1]} : vector<3x1xf32> to vector<1x1xf32>
    %117 = vector.broadcast %116 : vector<1x1xf32> to vector<32x1xf32>
    %118 = arith.mulf %115, %117 : vector<32x1xf32>
    %119 = arith.addf %114, %118 : vector<32x1xf32>
    %120 = vector.extract_strided_slice %0 {offsets = [0, 6], sizes = [32, 1], strides = [1, 1]} : vector<32x8xf32> to vector<32x1xf32>
    %121 = vector.broadcast %82 : vector<1x1xf32> to vector<32x1xf32>
    %122 = arith.mulf %120, %121 : vector<32x1xf32>
    %123 = arith.addf %119, %122 : vector<32x1xf32>
    %124 = vector.extract_strided_slice %0 {offsets = [0, 7], sizes = [32, 1], strides = [1, 1]} : vector<32x8xf32> to vector<32x1xf32>
    %125 = vector.broadcast %88 : vector<1x1xf32> to vector<32x1xf32>
    %126 = arith.mulf %124, %125 : vector<32x1xf32>
    %127 = arith.addf %123, %126 : vector<32x1xf32>
    %c0_i32 = arith.constant 0 : i32
    %128 = vector.broadcast %c0_i32 : i32 to vector<1x128xi32>
    %129 = arith.cmpi sge, %3, %128 : vector<1x128xi32>
    %c64_i32_38 = arith.constant 64 : i32
    %130 = vector.broadcast %c64_i32_38 : i32 to vector<1x128xi32>
    %131 = arith.cmpi slt, %3, %130 : vector<1x128xi32>
    %132 = arith.andi %129, %131 : vector<1x128xi1>
    %133 = vector.shape_cast %132 : vector<1x128xi1> to vector<1x128xi1>
    %134 = vector.broadcast %133 : vector<1x128xi1> to vector<32x128xi1>
    %135 = vector.shape_cast %127 : vector<32x1xf32> to vector<32x1xf32>
    %136 = vector.broadcast %135 : vector<32x1xf32> to vector<32x128xf32>
    %137 = arith.select %134, %136, %8 : vector<32x128xi1>, vector<32x128xf32>
    %c0_39 = arith.constant 0 : index
    %c0_40 = arith.constant 0 : index
    %138 = memref.load %arg6[%c0_39, %c0_40] : memref<4x2xf32, #tpu.memory_space<smem>>
    %139 = vector.broadcast %138 : f32 to vector<1x128xf32>
    %140 = arith.select %132, %139, %4 : vector<1x128xi1>, vector<1x128xf32>
    %c1 = arith.constant 1 : index
    %c0_41 = arith.constant 0 : index
    %141 = memref.load %arg6[%c1, %c0_41] : memref<4x2xf32, #tpu.memory_space<smem>>
    %142 = vector.broadcast %141 : f32 to vector<1x128xf32>
    %143 = arith.select %132, %142, %5 : vector<1x128xi1>, vector<1x128xf32>
    %c2 = arith.constant 2 : index
    %c0_42 = arith.constant 0 : index
    %144 = memref.load %arg6[%c2, %c0_42] : memref<4x2xf32, #tpu.memory_space<smem>>
    %145 = vector.broadcast %144 : f32 to vector<1x128xf32>
    %146 = arith.select %132, %145, %6 : vector<1x128xi1>, vector<1x128xf32>
    %c3 = arith.constant 3 : index
    %c0_43 = arith.constant 0 : index
    %147 = memref.load %arg6[%c3, %c0_43] : memref<4x2xf32, #tpu.memory_space<smem>>
    %148 = vector.broadcast %147 : f32 to vector<1x128xf32>
    %149 = arith.select %132, %148, %7 : vector<1x128xi1>, vector<1x128xf32>
    %c1_44 = arith.constant 1 : index
    %c0_45 = arith.constant 0 : index
    %c0_46 = arith.constant 0 : index
    %150 = vector.load %arg1[%c1_44, %c0_45, %c0_46] : memref<2x256x3xf32, #tpu.memory_space<vmem>>, vector<1x256x3xf32>
    %151 = vector.shape_cast %150 : vector<1x256x3xf32> to vector<256x3xf32>
    %c1_47 = arith.constant 1 : index
    %c0_48 = arith.constant 0 : index
    %c0_49 = arith.constant 0 : index
    %152 = vector.load %arg2[%c1_47, %c0_48, %c0_49] : memref<2x3x128xf32, #tpu.memory_space<vmem>>, vector<1x3x128xf32>
    %153 = vector.shape_cast %152 : vector<1x3x128xf32> to vector<3x128xf32>
    %154 = arith.mulf %151, %151 : vector<256x3xf32>
    %cst_50 = arith.constant dense<0.000000e+00> : vector<256xf32>
    %155 = vector.multi_reduction <add>, %154, %cst_50 [1] : vector<256x3xf32> to vector<256xf32>
    %156 = vector.shape_cast %155 : vector<256xf32> to vector<256x1xf32>
    %cst_51 = arith.constant dense<0.000000e+00> : vector<256x128xf32>
    %157 = tpu.matmul %151, %153, %cst_51 {dimension_numbers = #tpu.dot_dimension_numbers<[1], [0], [0], [1], [0, 0, 1, 1], [], []>} : vector<256x3xf32>, vector<3x128xf32>, vector<256x128xf32> -> vector<256x128xf32>
    %158 = vector.extract_strided_slice %153 {offsets = [0, 0], sizes = [1, 128], strides = [1, 1]} : vector<3x128xf32> to vector<1x128xf32>
    %159 = vector.extract_strided_slice %153 {offsets = [0, 0], sizes = [1, 128], strides = [1, 1]} : vector<3x128xf32> to vector<1x128xf32>
    %160 = arith.mulf %158, %159 : vector<1x128xf32>
    %161 = vector.extract_strided_slice %153 {offsets = [1, 0], sizes = [1, 128], strides = [1, 1]} : vector<3x128xf32> to vector<1x128xf32>
    %162 = vector.extract_strided_slice %153 {offsets = [1, 0], sizes = [1, 128], strides = [1, 1]} : vector<3x128xf32> to vector<1x128xf32>
    %163 = arith.mulf %161, %162 : vector<1x128xf32>
    %164 = arith.addf %160, %163 : vector<1x128xf32>
    %165 = vector.extract_strided_slice %153 {offsets = [2, 0], sizes = [1, 128], strides = [1, 1]} : vector<3x128xf32> to vector<1x128xf32>
    %166 = vector.extract_strided_slice %153 {offsets = [2, 0], sizes = [1, 128], strides = [1, 1]} : vector<3x128xf32> to vector<1x128xf32>
    %167 = arith.mulf %165, %166 : vector<1x128xf32>
    %168 = arith.addf %164, %167 : vector<1x128xf32>
    %cst_52 = arith.constant 2.000000e+00 : f32
    %169 = vector.broadcast %cst_52 : f32 to vector<256x128xf32>
    %170 = arith.mulf %169, %157 : vector<256x128xf32>
    %171 = vector.broadcast %156 : vector<256x1xf32> to vector<256x128xf32>
    %172 = arith.subf %171, %170 : vector<256x128xf32>
    %cst_53 = arith.constant dense<0x7F800000> : vector<128xf32>
    %173 = vector.multi_reduction <minimumf>, %172, %cst_53 [0] : vector<256x128xf32> to vector<128xf32>
    %174 = vector.shape_cast %173 : vector<128xf32> to vector<1x128xf32>
    %175 = arith.addf %174, %168 : vector<1x128xf32>
    %cst_54 = arith.constant 0.000000e+00 : f32
    %176 = vector.broadcast %cst_54 : f32 to vector<1x128xf32>
    %177 = arith.maximumf %175, %176 : vector<1x128xf32>
    %178 = math.sqrt %177 : vector<1x128xf32>
    %cst_55 = arith.constant -3.000000e+01 : f32
    %179 = vector.broadcast %cst_55 : f32 to vector<1x128xf32>
    %180 = arith.mulf %179, %178 : vector<1x128xf32>
    %181 = arith.negf %180 : vector<1x128xf32>
    %182 = math.exp %181 : vector<1x128xf32>
    %cst_56 = arith.constant 1.000000e+00 : f32
    %183 = vector.broadcast %cst_56 : f32 to vector<1x128xf32>
    %184 = arith.addf %183, %182 : vector<1x128xf32>
    %185 = arith.divf %183, %184 : vector<1x128xf32>
    %cst_57 = arith.constant 2.000000e+00 : f32
    %186 = vector.broadcast %cst_57 : f32 to vector<1x128xf32>
    %187 = arith.mulf %186, %185 : vector<1x128xf32>
    %c1_58 = arith.constant 1 : index
    %c0_59 = arith.constant 0 : index
    %c0_60 = arith.constant 0 : index
    %188 = vector.load %arg3[%c1_58, %c0_59, %c0_60] : memref<2x3x64xf32, #tpu.memory_space<vmem>>, vector<1x3x64xf32>
    %189 = vector.shape_cast %188 : vector<1x3x64xf32> to vector<3x64xf32>
    %cst_61 = arith.constant dense<0.000000e+00> : vector<3xf32>
    %190 = vector.multi_reduction <add>, %189, %cst_61 [1] : vector<3x64xf32> to vector<3xf32>
    %191 = vector.shape_cast %190 : vector<3xf32> to vector<3x1xf32>
    %cst_62 = arith.constant 6.400000e+01 : f32
    %192 = vector.broadcast %cst_62 : f32 to vector<3x1xf32>
    %193 = arith.divf %191, %192 : vector<3x1xf32>
    %194 = vector.broadcast %193 : vector<3x1xf32> to vector<3x64xf32>
    %195 = arith.subf %189, %194 : vector<3x64xf32>
    %196 = vector.extract_strided_slice %195 {offsets = [0, 0], sizes = [1, 64], strides = [1, 1]} : vector<3x64xf32> to vector<1x64xf32>
    %197 = arith.mulf %196, %196 : vector<1x64xf32>
    %198 = vector.extract_strided_slice %195 {offsets = [1, 0], sizes = [1, 64], strides = [1, 1]} : vector<3x64xf32> to vector<1x64xf32>
    %199 = arith.mulf %198, %198 : vector<1x64xf32>
    %200 = arith.addf %197, %199 : vector<1x64xf32>
    %201 = vector.extract_strided_slice %195 {offsets = [2, 0], sizes = [1, 64], strides = [1, 1]} : vector<3x64xf32> to vector<1x64xf32>
    %202 = arith.mulf %201, %201 : vector<1x64xf32>
    %203 = arith.addf %200, %202 : vector<1x64xf32>
    %204 = math.sqrt %203 : vector<1x64xf32>
    %cst_63 = arith.constant 9.99999993E-9 : f32
    %205 = vector.broadcast %cst_63 : f32 to vector<1x64xf32>
    %206 = arith.addf %204, %205 : vector<1x64xf32>
    %cst_64 = arith.constant 1.000000e+00 : f32
    %207 = vector.broadcast %cst_64 : f32 to vector<1x64xf32>
    %208 = arith.divf %207, %206 : vector<1x64xf32>
    %209 = vector.broadcast %208 : vector<1x64xf32> to vector<3x64xf32>
    %210 = arith.mulf %195, %209 : vector<3x64xf32>
    %cst_65 = arith.constant dense<0.000000e+00> : vector<3xf32>
    %211 = vector.multi_reduction <add>, %210, %cst_65 [1] : vector<3x64xf32> to vector<3xf32>
    %212 = vector.shape_cast %211 : vector<3xf32> to vector<3x1xf32>
    %cst_66 = arith.constant 6.400000e+01 : f32
    %213 = vector.broadcast %cst_66 : f32 to vector<3x1xf32>
    %214 = arith.divf %212, %213 : vector<3x1xf32>
    %215 = tpu.iota {dimensions = array<i32: 1>} : vector<1x128xi32>
    %c64_i32_67 = arith.constant 64 : i32
    %216 = vector.broadcast %c64_i32_67 : i32 to vector<1x128xi32>
    %217 = arith.cmpi slt, %215, %216 : vector<1x128xi32>
    %cst_68 = arith.constant 0.000000e+00 : f32
    %218 = vector.broadcast %cst_68 : f32 to vector<1x128xf32>
    %219 = arith.select %217, %187, %218 : vector<1x128xi1>, vector<1x128xf32>
    %cst_69 = arith.constant dense<0.000000e+00> : vector<1xf32>
    %220 = vector.multi_reduction <add>, %219, %cst_69 [1] : vector<1x128xf32> to vector<1xf32>
    %221 = vector.shape_cast %220 : vector<1xf32> to vector<1x1xf32>
    %cst_70 = arith.constant 6.400000e+01 : f32
    %222 = vector.broadcast %cst_70 : f32 to vector<1x1xf32>
    %223 = arith.divf %221, %222 : vector<1x1xf32>
    %cst_71 = arith.constant 0.000000e+00 : f32
    %224 = vector.broadcast %cst_71 : f32 to vector<1x128xf32>
    %225 = arith.select %217, %224, %187 : vector<1x128xi1>, vector<1x128xf32>
    %cst_72 = arith.constant dense<0.000000e+00> : vector<1xf32>
    %226 = vector.multi_reduction <add>, %225, %cst_72 [1] : vector<1x128xf32> to vector<1xf32>
    %227 = vector.shape_cast %226 : vector<1xf32> to vector<1x1xf32>
    %cst_73 = arith.constant 6.400000e+01 : f32
    %228 = vector.broadcast %cst_73 : f32 to vector<1x1xf32>
    %229 = arith.divf %227, %228 : vector<1x1xf32>
    %230 = vector.extract_strided_slice %2 {offsets = [0, 1], sizes = [32, 1], strides = [1, 1]} : vector<32x2xf32> to vector<32x1xf32>
    %231 = vector.extract_strided_slice %0 {offsets = [0, 0], sizes = [32, 1], strides = [1, 1]} : vector<32x8xf32> to vector<32x1xf32>
    %232 = vector.extract_strided_slice %193 {offsets = [0, 0], sizes = [1, 1], strides = [1, 1]} : vector<3x1xf32> to vector<1x1xf32>
    %233 = vector.broadcast %232 : vector<1x1xf32> to vector<32x1xf32>
    %234 = arith.mulf %231, %233 : vector<32x1xf32>
    %235 = arith.addf %230, %234 : vector<32x1xf32>
    %236 = vector.extract_strided_slice %0 {offsets = [0, 3], sizes = [32, 1], strides = [1, 1]} : vector<32x8xf32> to vector<32x1xf32>
    %237 = vector.extract_strided_slice %214 {offsets = [0, 0], sizes = [1, 1], strides = [1, 1]} : vector<3x1xf32> to vector<1x1xf32>
    %238 = vector.broadcast %237 : vector<1x1xf32> to vector<32x1xf32>
    %239 = arith.mulf %236, %238 : vector<32x1xf32>
    %240 = arith.addf %235, %239 : vector<32x1xf32>
    %241 = vector.extract_strided_slice %0 {offsets = [0, 1], sizes = [32, 1], strides = [1, 1]} : vector<32x8xf32> to vector<32x1xf32>
    %242 = vector.extract_strided_slice %193 {offsets = [1, 0], sizes = [1, 1], strides = [1, 1]} : vector<3x1xf32> to vector<1x1xf32>
    %243 = vector.broadcast %242 : vector<1x1xf32> to vector<32x1xf32>
    %244 = arith.mulf %241, %243 : vector<32x1xf32>
    %245 = arith.addf %240, %244 : vector<32x1xf32>
    %246 = vector.extract_strided_slice %0 {offsets = [0, 4], sizes = [32, 1], strides = [1, 1]} : vector<32x8xf32> to vector<32x1xf32>
    %247 = vector.extract_strided_slice %214 {offsets = [1, 0], sizes = [1, 1], strides = [1, 1]} : vector<3x1xf32> to vector<1x1xf32>
    %248 = vector.broadcast %247 : vector<1x1xf32> to vector<32x1xf32>
    %249 = arith.mulf %246, %248 : vector<32x1xf32>
    %250 = arith.addf %245, %249 : vector<32x1xf32>
    %251 = vector.extract_strided_slice %0 {offsets = [0, 2], sizes = [32, 1], strides = [1, 1]} : vector<32x8xf32> to vector<32x1xf32>
    %252 = vector.extract_strided_slice %193 {offsets = [2, 0], sizes = [1, 1], strides = [1, 1]} : vector<3x1xf32> to vector<1x1xf32>
    %253 = vector.broadcast %252 : vector<1x1xf32> to vector<32x1xf32>
    %254 = arith.mulf %251, %253 : vector<32x1xf32>
    %255 = arith.addf %250, %254 : vector<32x1xf32>
    %256 = vector.extract_strided_slice %0 {offsets = [0, 5], sizes = [32, 1], strides = [1, 1]} : vector<32x8xf32> to vector<32x1xf32>
    %257 = vector.extract_strided_slice %214 {offsets = [2, 0], sizes = [1, 1], strides = [1, 1]} : vector<3x1xf32> to vector<1x1xf32>
    %258 = vector.broadcast %257 : vector<1x1xf32> to vector<32x1xf32>
    %259 = arith.mulf %256, %258 : vector<32x1xf32>
    %260 = arith.addf %255, %259 : vector<32x1xf32>
    %261 = vector.extract_strided_slice %0 {offsets = [0, 6], sizes = [32, 1], strides = [1, 1]} : vector<32x8xf32> to vector<32x1xf32>
    %262 = vector.broadcast %223 : vector<1x1xf32> to vector<32x1xf32>
    %263 = arith.mulf %261, %262 : vector<32x1xf32>
    %264 = arith.addf %260, %263 : vector<32x1xf32>
    %265 = vector.extract_strided_slice %0 {offsets = [0, 7], sizes = [32, 1], strides = [1, 1]} : vector<32x8xf32> to vector<32x1xf32>
    %266 = vector.broadcast %229 : vector<1x1xf32> to vector<32x1xf32>
    %267 = arith.mulf %265, %266 : vector<32x1xf32>
    %268 = arith.addf %264, %267 : vector<32x1xf32>
    %c64_i32_74 = arith.constant 64 : i32
    %269 = vector.broadcast %c64_i32_74 : i32 to vector<1x128xi32>
    %270 = arith.cmpi sge, %3, %269 : vector<1x128xi32>
    %c128_i32 = arith.constant 128 : i32
    %271 = vector.broadcast %c128_i32 : i32 to vector<1x128xi32>
    %272 = arith.cmpi slt, %3, %271 : vector<1x128xi32>
    %273 = arith.andi %270, %272 : vector<1x128xi1>
    %274 = vector.shape_cast %273 : vector<1x128xi1> to vector<1x128xi1>
    %275 = vector.broadcast %274 : vector<1x128xi1> to vector<32x128xi1>
    %276 = vector.shape_cast %268 : vector<32x1xf32> to vector<32x1xf32>
    %277 = vector.broadcast %276 : vector<32x1xf32> to vector<32x128xf32>
    %278 = arith.select %275, %277, %137 : vector<32x128xi1>, vector<32x128xf32>
    %c0_75 = arith.constant 0 : index
    %c1_76 = arith.constant 1 : index
    %279 = memref.load %arg6[%c0_75, %c1_76] : memref<4x2xf32, #tpu.memory_space<smem>>
    %280 = vector.broadcast %279 : f32 to vector<1x128xf32>
    %281 = arith.select %273, %280, %140 : vector<1x128xi1>, vector<1x128xf32>
    %c1_77 = arith.constant 1 : index
    %c1_78 = arith.constant 1 : index
    %282 = memref.load %arg6[%c1_77, %c1_78] : memref<4x2xf32, #tpu.memory_space<smem>>
    %283 = vector.broadcast %282 : f32 to vector<1x128xf32>
    %284 = arith.select %273, %283, %143 : vector<1x128xi1>, vector<1x128xf32>
    %c2_79 = arith.constant 2 : index
    %c1_80 = arith.constant 1 : index
    %285 = memref.load %arg6[%c2_79, %c1_80] : memref<4x2xf32, #tpu.memory_space<smem>>
    %286 = vector.broadcast %285 : f32 to vector<1x128xf32>
    %287 = arith.select %273, %286, %146 : vector<1x128xi1>, vector<1x128xf32>
    %c3_81 = arith.constant 3 : index
    %c1_82 = arith.constant 1 : index
    %288 = memref.load %arg6[%c3_81, %c1_82] : memref<4x2xf32, #tpu.memory_space<smem>>
    %289 = vector.broadcast %288 : f32 to vector<1x128xf32>
    %290 = arith.select %273, %289, %149 : vector<1x128xi1>, vector<1x128xf32>
    %c0_83 = arith.constant 0 : index
    %c0_84 = arith.constant 0 : index
    %291 = vector.load %arg4[%c0_83, %c0_84] : memref<8x128xf32, #tpu.memory_space<vmem>>, vector<8x128xf32>
    %292 = vector.broadcast %281 : vector<1x128xf32> to vector<8x128xf32>
    %293 = arith.mulf %292, %291 : vector<8x128xf32>
    %c0_85 = arith.constant 0 : index
    %c0_86 = arith.constant 0 : index
    %294 = vector.load %arg5[%c0_85, %c0_86] : memref<8x128xf32, #tpu.memory_space<vmem>>, vector<8x128xf32>
    %295 = vector.broadcast %284 : vector<1x128xf32> to vector<8x128xf32>
    %296 = arith.mulf %295, %294 : vector<8x128xf32>
    %297 = arith.addf %293, %296 : vector<8x128xf32>
    %298 = vector.extract_strided_slice %1 {offsets = [0, 0], sizes = [32, 1], strides = [1, 1]} : vector<32x3xf32> to vector<32x1xf32>
    %299 = vector.extract_strided_slice %297 {offsets = [0, 0], sizes = [1, 128], strides = [1, 1]} : vector<8x128xf32> to vector<1x128xf32>
    %300 = vector.broadcast %298 : vector<32x1xf32> to vector<32x128xf32>
    %301 = vector.broadcast %299 : vector<1x128xf32> to vector<32x128xf32>
    %302 = arith.mulf %300, %301 : vector<32x128xf32>
    %303 = arith.addf %278, %302 : vector<32x128xf32>
    %304 = vector.extract_strided_slice %1 {offsets = [0, 1], sizes = [32, 1], strides = [1, 1]} : vector<32x3xf32> to vector<32x1xf32>
    %305 = vector.extract_strided_slice %297 {offsets = [1, 0], sizes = [1, 128], strides = [1, 1]} : vector<8x128xf32> to vector<1x128xf32>
    %306 = vector.broadcast %304 : vector<32x1xf32> to vector<32x128xf32>
    %307 = vector.broadcast %305 : vector<1x128xf32> to vector<32x128xf32>
    %308 = arith.mulf %306, %307 : vector<32x128xf32>
    %309 = arith.addf %303, %308 : vector<32x128xf32>
    %310 = vector.extract_strided_slice %1 {offsets = [0, 2], sizes = [32, 1], strides = [1, 1]} : vector<32x3xf32> to vector<32x1xf32>
    %311 = vector.extract_strided_slice %297 {offsets = [2, 0], sizes = [1, 128], strides = [1, 1]} : vector<8x128xf32> to vector<1x128xf32>
    %312 = vector.broadcast %310 : vector<32x1xf32> to vector<32x128xf32>
    %313 = vector.broadcast %311 : vector<1x128xf32> to vector<32x128xf32>
    %314 = arith.mulf %312, %313 : vector<32x128xf32>
    %315 = arith.addf %309, %314 : vector<32x128xf32>
    %cst_87 = arith.constant 0.000000e+00 : f32
    %316 = vector.broadcast %cst_87 : f32 to vector<32x128xf32>
    %317 = arith.maximumf %315, %316 : vector<32x128xf32>
    %c0_88 = arith.constant 0 : index
    %c0_89 = arith.constant 0 : index
    %318 = vector.load %arg10[%c0_88, %c0_89] : memref<8x32xf32, #tpu.memory_space<vmem>>, vector<8x32xf32>
    %cst_90 = arith.constant dense<0.000000e+00> : vector<8x128xf32>
    %319 = tpu.matmul %318, %317, %cst_90 {dimension_numbers = #tpu.dot_dimension_numbers<[1], [0], [0], [1], [0, 0, 1, 1], [], []>} : vector<8x32xf32>, vector<32x128xf32>, vector<8x128xf32> -> vector<8x128xf32>
    %c0_91 = arith.constant 0 : index
    %c0_92 = arith.constant 0 : index
    %320 = vector.load %arg11[%c0_91, %c0_92] : memref<8x1xf32, #tpu.memory_space<vmem>>, vector<8x1xf32>
    %321 = vector.broadcast %320 : vector<8x1xf32> to vector<8x128xf32>
    %322 = arith.addf %319, %321 : vector<8x128xf32>
    %323 = vector.broadcast %287 : vector<1x128xf32> to vector<8x128xf32>
    %324 = arith.mulf %323, %297 : vector<8x128xf32>
    %325 = vector.broadcast %290 : vector<1x128xf32> to vector<8x128xf32>
    %326 = arith.mulf %325, %322 : vector<8x128xf32>
    %327 = arith.subf %324, %326 : vector<8x128xf32>
    %c0_93 = arith.constant 0 : index
    %c0_94 = arith.constant 0 : index
    %c0_95 = arith.constant 0 : index
    %328 = vector.load %arg12[%c0_93, %c0_94, %c0_95] : memref<2x8x128xf32, #tpu.memory_space<vmem>>, vector<1x8x128xf32>
    %329 = vector.shape_cast %328 : vector<1x8x128xf32> to vector<8x128xf32>
    %330 = vector.shape_cast %322 : vector<8x128xf32> to vector<1x8x128xf32>
    tpu.vector_store %arg12[%c0_93, %c0_94, %c0_95], %330 {strides = array<i32>} : memref<2x8x128xf32, #tpu.memory_space<vmem>>, vector<1x8x128xf32>,
    %c1_96 = arith.constant 1 : index
    %c0_97 = arith.constant 0 : index
    %c0_98 = arith.constant 0 : index
    %331 = vector.load %arg12[%c1_96, %c0_97, %c0_98] : memref<2x8x128xf32, #tpu.memory_space<vmem>>, vector<1x8x128xf32>
    %332 = vector.shape_cast %331 : vector<1x8x128xf32> to vector<8x128xf32>
    %333 = vector.shape_cast %327 : vector<8x128xf32> to vector<1x8x128xf32>
    tpu.vector_store %arg12[%c1_96, %c0_97, %c0_98], %333 {strides = array<i32>} : memref<2x8x128xf32, #tpu.memory_space<vmem>>, vector<1x8x128xf32>,
    return
  }
  func.func @transform_0(%arg0: i32) -> (i32, i32, i32) {
    %c0_i32 = arith.constant 0 : i32
    %c0_i32_0 = arith.constant 0 : i32
    %c0_i32_1 = arith.constant 0 : i32
    %c0_i32_2 = arith.constant 0 : i32
    return %c0_i32, %c0_i32_0, %c0_i32_1 : i32, i32, i32
  }
  func.func @transform_1(%arg0: i32) -> (i32, i32, i32) {
    %c0_i32 = arith.constant 0 : i32
    %c0_i32_0 = arith.constant 0 : i32
    %c0_i32_1 = arith.constant 0 : i32
    %c0_i32_2 = arith.constant 0 : i32
    return %c0_i32, %c0_i32_0, %c0_i32_1 : i32, i32, i32
  }
  func.func @transform_2(%arg0: i32) -> (i32, i32, i32) {
    %c0_i32 = arith.constant 0 : i32
    %c0_i32_0 = arith.constant 0 : i32
    %c0_i32_1 = arith.constant 0 : i32
    %c0_i32_2 = arith.constant 0 : i32
    return %c0_i32, %c0_i32_0, %c0_i32_1 : i32, i32, i32
  }
  func.func @transform_3(%arg0: i32) -> (i32, i32) {
    %c0_i32 = arith.constant 0 : i32
    %c0_i32_0 = arith.constant 0 : i32
    %c0_i32_1 = arith.constant 0 : i32
    return %c0_i32, %c0_i32_0 : i32, i32
  }
  func.func @transform_4(%arg0: i32) -> (i32, i32) {
    %c0_i32 = arith.constant 0 : i32
    %c0_i32_0 = arith.constant 0 : i32
    %c0_i32_1 = arith.constant 0 : i32
    return %c0_i32, %c0_i32_0 : i32, i32
  }
  func.func @transform_5(%arg0: i32) -> (i32, i32) {
    %c0_i32 = arith.constant 0 : i32
    %c0_i32_0 = arith.constant 0 : i32
    %c0_i32_1 = arith.constant 0 : i32
    return %c0_i32, %c0_i32_0 : i32, i32
  }
  func.func @transform_6(%arg0: i32) -> (i32, i32) {
    %c0_i32 = arith.constant 0 : i32
    %c0_i32_0 = arith.constant 0 : i32
    %c0_i32_1 = arith.constant 0 : i32
    return %c0_i32, %c0_i32_0 : i32, i32
  }
  func.func @transform_7(%arg0: i32) -> (i32, i32) {
    %c0_i32 = arith.constant 0 : i32
    %c0_i32_0 = arith.constant 0 : i32
    %c0_i32_1 = arith.constant 0 : i32
    return %c0_i32, %c0_i32_0 : i32, i32
  }
  func.func @transform_8(%arg0: i32) -> (i32, i32) {
    %c0_i32 = arith.constant 0 : i32
    %c0_i32_0 = arith.constant 0 : i32
    %c0_i32_1 = arith.constant 0 : i32
    return %c0_i32, %c0_i32_0 : i32, i32
  }
  func.func @transform_9(%arg0: i32) -> (i32, i32) {
    %c0_i32 = arith.constant 0 : i32
    %c0_i32_0 = arith.constant 0 : i32
    %c0_i32_1 = arith.constant 0 : i32
    return %c0_i32, %c0_i32_0 : i32, i32
  }
  func.func @transform_10(%arg0: i32) -> (i32, i32) {
    %c0_i32 = arith.constant 0 : i32
    %c0_i32_0 = arith.constant 0 : i32
    %c0_i32_1 = arith.constant 0 : i32
    return %c0_i32, %c0_i32_0 : i32, i32
  }
  func.func @transform_11(%arg0: i32) -> (i32, i32, i32) {
    %c0_i32 = arith.constant 0 : i32
    %c0_i32_0 = arith.constant 0 : i32
    %c0_i32_1 = arith.constant 0 : i32
    %c0_i32_2 = arith.constant 0 : i32
    return %c0_i32, %c0_i32_0, %c0_i32_1 : i32, i32, i32
  }
}

</mosaic_0001>

<llo_original>
// kernel: ddpm_forward.21
$region0: #{ddpm_forward.21}
  #allocation0 [shape = 'u32[]', space=smem, size = 0x4, offset = 0x4, fixed_abs, tag = 'smem constant byte address 0x4 - core index']
  #allocation1 [shape = 'u32[144,128]{1,0:T(1,128)}', space=vmem, size = 0x12000, scoped, tag = 'internal scratch']
  %s0 = inlined_call_operand.vmem [shape: f32[2,256,3], index: 0, kind: input, shape index: {}]
  %s1 = inlined_call_operand.vmem [shape: f32[2,3,128], index: 1, kind: input, shape index: {}]
  %s2 = inlined_call_operand.vmem [shape: f32[2,3,64], index: 2, kind: input, shape index: {}]
  %s3 = inlined_call_operand.vmem [shape: f32[8,128], index: 3, kind: input, shape index: {}]
  %s4 = inlined_call_operand.vmem [shape: f32[8,128], index: 4, kind: input, shape index: {}]
  %s5 = inlined_call_operand.vmem [shape: f32[4,2], index: 5, kind: input, shape index: {}]
  %s6 = inlined_call_operand.vmem [shape: f32[32,2], index: 6, kind: input, shape index: {}]
  %s7 = inlined_call_operand.vmem [shape: f32[32,8], index: 7, kind: input, shape index: {}]
  %s8 = inlined_call_operand.vmem [shape: f32[32,3], index: 8, kind: input, shape index: {}]
  %s9 = inlined_call_operand.vmem [shape: f32[8,32], index: 9, kind: input, shape index: {}]
  %s10 = inlined_call_operand.vmem [shape: f32[8,1], index: 10, kind: input, shape index: {}]
  %s11 = inlined_call_operand.vmem [shape: f32[2,8,128], index: 11, kind: output, shape index: {}]
  %s12 = sld [smem:[#allocation0]]
  $region58: #{ddpm_forward.21} parent=0
    _
  %s14 = ssub.s32 1, %s12
  %s15 = scalar_select 0, %s14, %s12
  $region1: #{ddpm_forward.21} parent=0
    #allocation2 [shape = 'u8[2048]{0}', space=smem, size = 0x800, scoped, tag = 'input window, operand 5, single buffered']
    #allocation3 [shape = 's32[1]{0}', space=sflag, size = 0x4, scoped, tag = 'scoped memory for ddpm_forward.21']
    %16 = vsyncpa [#allocation3], 0
    // Predicated region
    $region2: #{ddpm_forward.21} parent=1 // pred_check
      _
    $region3: #{ddpm_forward.21} parent=1 // pred_check_branch
      %18 = sbr.rel (0) target = $region5
    $region4: #{ddpm_forward.21} parent=1 // pred_region
      _
    $region5: #{ddpm_forward.21} parent=1 // pred_fallthru
      _
    // Predicated region
    $region6: #{ddpm_forward.21} parent=1 // pred_check
      _
    $region7: #{ddpm_forward.21} parent=1 // pred_check_branch
      %20 = sbr.rel (0) target = $region9
    $region8: #{ddpm_forward.21} parent=1 // pred_region
      _
    $region9: #{ddpm_forward.21} parent=1 // pred_fallthru
      _
    // Predicated region
    $region10: #{ddpm_forward.21} parent=1 // pred_check
      _
    $region11: #{ddpm_forward.21} parent=1 // pred_check_branch
      %22 = sbr.rel (0) target = $region13
    $region12: #{ddpm_forward.21} parent=1 // pred_region
      _
    $region13: #{ddpm_forward.21} parent=1 // pred_fallthru
      _
    // Predicated region
    $region14: #{ddpm_forward.21} parent=1 // pred_check
      _
    $region15: #{ddpm_forward.21} parent=1 // pred_check_branch
      %24 = sbr.rel (0) target = $region17
    $region16: #{ddpm_forward.21} parent=1 // pred_region
      _
    $region17: #{ddpm_forward.21} parent=1 // pred_fallthru
      _
    // Predicated region
    $region18: #{ddpm_forward.21} parent=1 // pred_check
      _
    $region19: #{ddpm_forward.21} parent=1 // pred_check_branch
      %26 = sbr.rel (0) target = $region21
    $region20: #{ddpm_forward.21} parent=1 // pred_region
      _
    $region21: #{ddpm_forward.21} parent=1 // pred_fallthru
      _
    // Predicated region
    $region22: #{ddpm_forward.21} parent=1 // pred_check
      _
    $region23: #{ddpm_forward.21} parent=1 // pred_check_branch
      %28 = sbr.rel (0) target = $region25
    $region24: #{ddpm_forward.21} parent=1 // pred_region
      %s30 = ssub.s32 64, 64
      %31 = vsyncadd [#allocation3], %s30
      %s33 = sshll.u32 %s5, 4
      %s34 = int_to_ptr.vmem [resolvable:$true] %s33
      %36 = dma.vmem_to_smem %s34, 64, [#allocation2], [#allocation3]
    $region25: #{ddpm_forward.21} parent=1 // pred_fallthru
      _
    // Predicated region
    $region26: #{ddpm_forward.21} parent=1 // pred_check
      _
    $region27: #{ddpm_forward.21} parent=1 // pred_check_branch
      %38 = sbr.rel (0) target = $region29
    $region28: #{ddpm_forward.21} parent=1 // pred_region
      _
    $region29: #{ddpm_forward.21} parent=1 // pred_fallthru
      _
    // Predicated region
    $region30: #{ddpm_forward.21} parent=1 // pred_check
      _
    $region31: #{ddpm_forward.21} parent=1 // pred_check_branch
      %40 = sbr.rel (0) target = $region33
    $region32: #{ddpm_forward.21} parent=1 // pred_region
      _
    $region33: #{ddpm_forward.21} parent=1 // pred_fallthru
      _
    // Predicated region
    $region34: #{ddpm_forward.21} parent=1 // pred_check
      _
    $region35: #{ddpm_forward.21} parent=1 // pred_check_branch
      %42 = sbr.rel (0) target = $region37
    $region36: #{ddpm_forward.21} parent=1 // pred_region
      _
    $region37: #{ddpm_forward.21} parent=1 // pred_fallthru
      _
    // Predicated region
    $region38: #{ddpm_forward.21} parent=1 // pred_check
      _
    $region39: #{ddpm_forward.21} parent=1 // pred_check_branch
      %44 = sbr.rel (0) target = $region41
    $region40: #{ddpm_forward.21} parent=1 // pred_region
      _
    $region41: #{ddpm_forward.21} parent=1 // pred_fallthru
      _
    // Predicated region
    $region42: #{ddpm_forward.21} parent=1 // pred_check
      _
    $region43: #{ddpm_forward.21} parent=1 // pred_check_branch
      %46 = sbr.rel (0) target = $region45
    $region44: #{ddpm_forward.21} parent=1 // pred_region
      _
    $region45: #{ddpm_forward.21} parent=1 // pred_fallthru
      _
    // Predicated region
    $region46: #{ddpm_forward.21} parent=1 // pred_check
      _
    $region47: #{ddpm_forward.21} parent=1 // pred_check_branch
      %48 = sbr.rel (0) target = $region49
    $region48: #{ddpm_forward.21} parent=1 // pred_region
      %49 = dma.done [#allocation3], 64
    $region49: #{ddpm_forward.21} parent=1 // pred_fallthru
      _
    %50 = sfence
    %v51 = vld [vmem:[%s7] sm:$0xff]
    %v52 = vld [vmem:[%s7 + $0x8] sm:$0xff]
    %v53 = vld [vmem:[%s7 + $0x10] sm:$0xff]
    %v54 = vld [vmem:[%s7 + $0x18] sm:$0xff]
    %v55 = vld [vmem:[%s8] sm:$0xff]
    %v56 = vld [vmem:[%s8 + $0x8] sm:$0xff]
    %v57 = vld [vmem:[%s8 + $0x10] sm:$0xff]
    %v58 = vld [vmem:[%s8 + $0x18] sm:$0xff]
    %v59 = vld [vmem:[%s6] sm:$0xff]
    %v60 = vld [vmem:[%s6 + $0x8] sm:$0xff]
    %v61 = vld [vmem:[%s6 + $0x10] sm:$0xff]
    %v62 = vld [vmem:[%s6 + $0x18] sm:$0xff]
    %v63 = vlaneseq
    %v64 = vand.u32 %v63, 127
    %v65 = vld [vmem:[%s0] sm:$0xff]
    %v66 = vld [vmem:[%s0 + $0x8] sm:$0xff]
    %v67 = vld [vmem:[%s0 + $0x10] sm:$0xff]
    %v68 = vld [vmem:[%s0 + $0x18] sm:$0xff]
    %v69 = vld [vmem:[%s0 + $0x20] sm:$0xff]
    %v70 = vld [vmem:[%s0 + $0x28] sm:$0xff]
    %v71 = vld [vmem:[%s0 + $0x30] sm:$0xff]
    %v72 = vld [vmem:[%s0 + $0x38] sm:$0xff]
    %v73 = vld [vmem:[%s0 + $0x40] sm:$0xff]
    %v74 = vld [vmem:[%s0 + $0x48] sm:$0xff]
    %v75 = vld [vmem:[%s0 + $0x50] sm:$0xff]
    %v76 = vld [vmem:[%s0 + $0x58] sm:$0xff]
    %v77 = vld [vmem:[%s0 + $0x60] sm:$0xff]
    %v78 = vld [vmem:[%s0 + $0x68] sm:$0xff]
    %v79 = vld [vmem:[%s0 + $0x70] sm:$0xff]
    %v80 = vld [vmem:[%s0 + $0x78] sm:$0xff]
    %v81 = vld [vmem:[%s0 + $0x80] sm:$0xff]
    %v82 = vld [vmem:[%s0 + $0x88] sm:$0xff]
    %v83 = vld [vmem:[%s0 + $0x90] sm:$0xff]
    %v84 = vld [vmem:[%s0 + $0x98] sm:$0xff]
    %v85 = vld [vmem:[%s0 + $0xa0] sm:$0xff]
    %v86 = vld [vmem:[%s0 + $0xa8] sm:$0xff]
    %v87 = vld [vmem:[%s0 + $0xb0] sm:$0xff]
    %v88 = vld [vmem:[%s0 + $0xb8] sm:$0xff]
    %v89 = vld [vmem:[%s0 + $0xc0] sm:$0xff]
    %v90 = vld [vmem:[%s0 + $0xc8] sm:$0xff]
    %v91 = vld [vmem:[%s0 + $0xd0] sm:$0xff]
    %v92 = vld [vmem:[%s0 + $0xd8] sm:$0xff]
    %v93 = vld [vmem:[%s0 + $0xe0] sm:$0xff]
    %v94 = vld [vmem:[%s0 + $0xe8] sm:$0xff]
    %v95 = vld [vmem:[%s0 + $0xf0] sm:$0xff]
    %v96 = vld [vmem:[%s0 + $0xf8] sm:$0xff]
    %v97 = vld [vmem:[%s1] sm:$0x7]
    %v98 = vmul.f32 %v65, %v65
    %v99 = vmul.f32 %v66, %v66
    %v100 = vmul.f32 %v67, %v67
    %v101 = vmul.f32 %v68, %v68
    %v102 = vmul.f32 %v69, %v69
    %v103 = vmul.f32 %v70, %v70
    %v104 = vmul.f32 %v71, %v71
    %v105 = vmul.f32 %v72, %v72
    %v106 = vmul.f32 %v73, %v73
    %v107 = vmul.f32 %v74, %v74
    %v108 = vmul.f32 %v75, %v75
    %v109 = vmul.f32 %v76, %v76
    %v110 = vmul.f32 %v77, %v77
    %v111 = vmul.f32 %v78, %v78
    %v112 = vmul.f32 %v79, %v79
    %v113 = vmul.f32 %v80, %v80
    %v114 = vmul.f32 %v81, %v81
    %v115 = vmul.f32 %v82, %v82
    %v116 = vmul.f32 %v83, %v83
    %v117 = vmul.f32 %v84, %v84
    %v118 = vmul.f32 %v85, %v85
    %v119 = vmul.f32 %v86, %v86
    %v120 = vmul.f32 %v87, %v87
    %v121 = vmul.f32 %v88, %v88
    %v122 = vmul.f32 %v89, %v89
    %v123 = vmul.f32 %v90, %v90
    %v124 = vmul.f32 %v91, %v91
    %v125 = vmul.f32 %v92, %v92
    %v126 = vmul.f32 %v93, %v93
    %v127 = vmul.f32 %v94, %v94
    %v128 = vmul.f32 %v95, %v95
    %v129 = vmul.f32 %v96, %v96
    %vm130 = vcmask 23552
    %v131 = vsel %vm130, %v98, 0.0
    %132 = vadd.xlane.f32.xlu0 %v131
    %v133 = vpop.xlane.xlu0 %132
    %v134 = vsel %vm130, %v99, 0.0
    %135 = vadd.xlane.f32.xlu0 %v134
    %v136 = vpop.xlane.xlu0 %135
    %v137 = vsel %vm130, %v100, 0.0
    %138 = vadd.xlane.f32.xlu0 %v137
    %v139 = vpop.xlane.xlu0 %138
    %v140 = vsel %vm130, %v101, 0.0
    %141 = vadd.xlane.f32.xlu0 %v140
    %v142 = vpop.xlane.xlu0 %141
    %v143 = vsel %vm130, %v102, 0.0
    %144 = vadd.xlane.f32.xlu0 %v143
    %v145 = vpop.xlane.xlu0 %144
    %v146 = vsel %vm130, %v103, 0.0
    %147 = vadd.xlane.f32.xlu0 %v146
    %v148 = vpop.xlane.xlu0 %147
    %v149 = vsel %vm130, %v104, 0.0
    %150 = vadd.xlane.f32.xlu0 %v149
    %v151 = vpop.xlane.xlu0 %150
    %v152 = vsel %vm130, %v105, 0.0
    %153 = vadd.xlane.f32.xlu0 %v152
    %v154 = vpop.xlane.xlu0 %153
    %v155 = vsel %vm130, %v106, 0.0
    %156 = vadd.xlane.f32.xlu0 %v155
    %v157 = vpop.xlane.xlu0 %156
    %v158 = vsel %vm130, %v107, 0.0
    %159 = vadd.xlane.f32.xlu0 %v158
    %v160 = vpop.xlane.xlu0 %159
    %v161 = vsel %vm130, %v108, 0.0
    %162 = vadd.xlane.f32.xlu0 %v161
    %v163 = vpop.xlane.xlu0 %162
    %v164 = vsel %vm130, %v109, 0.0
    %165 = vadd.xlane.f32.xlu0 %v164
    %v166 = vpop.xlane.xlu0 %165
    %v167 = vsel %vm130, %v110, 0.0
    %168 = vadd.xlane.f32.xlu0 %v167
    %v169 = vpop.xlane.xlu0 %168
    %v170 = vsel %vm130, %v111, 0.0
    %171 = vadd.xlane.f32.xlu0 %v170
    %v172 = vpop.xlane.xlu0 %171
    %v173 = vsel %vm130, %v112, 0.0
    %174 = vadd.xlane.f32.xlu0 %v173
    %v175 = vpop.xlane.xlu0 %174
    %v176 = vsel %vm130, %v113, 0.0
    %177 = vadd.xlane.f32.xlu0 %v176
    %v178 = vpop.xlane.xlu0 %177
    %v179 = vsel %vm130, %v114, 0.0
    %180 = vadd.xlane.f32.xlu0 %v179
    %v181 = vpop.xlane.xlu0 %180
    %v182 = vsel %vm130, %v115, 0.0
    %183 = vadd.xlane.f32.xlu0 %v182
    %v184 = vpop.xlane.xlu0 %183
    %v185 = vsel %vm130, %v116, 0.0
    %186 = vadd.xlane.f32.xlu0 %v185
    %v187 = vpop.xlane.xlu0 %186
    %v188 = vsel %vm130, %v117, 0.0
    %189 = vadd.xlane.f32.xlu0 %v188
    %v190 = vpop.xlane.xlu0 %189
    %v191 = vsel %vm130, %v118, 0.0
    %192 = vadd.xlane.f32.xlu0 %v191
    %v193 = vpop.xlane.xlu0 %192
    %v194 = vsel %vm130, %v119, 0.0
    %195 = vadd.xlane.f32.xlu0 %v194
    %v196 = vpop.xlane.xlu0 %195
    %v197 = vsel %vm130, %v120, 0.0
    %198 = vadd.xlane.f32.xlu0 %v197
    %v199 = vpop.xlane.xlu0 %198
    %v200 = vsel %vm130, %v121, 0.0
    %201 = vadd.xlane.f32.xlu0 %v200
    %v202 = vpop.xlane.xlu0 %201
    %v203 = vsel %vm130, %v122, 0.0
    %204 = vadd.xlane.f32.xlu0 %v203
    %v205 = vpop.xlane.xlu0 %204
    %v206 = vsel %vm130, %v123, 0.0
    %207 = vadd.xlane.f32.xlu0 %v206
    %v208 = vpop.xlane.xlu0 %207
    %v209 = vsel %vm130, %v124, 0.0
    %210 = vadd.xlane.f32.xlu0 %v209
    %v211 = vpop.xlane.xlu0 %210
    %v212 = vsel %vm130, %v125, 0.0
    %213 = vadd.xlane.f32.xlu0 %v212
    %v214 = vpop.xlane.xlu0 %213
    %v215 = vsel %vm130, %v126, 0.0
    %216 = vadd.xlane.f32.xlu0 %v215
    %v217 = vpop.xlane.xlu0 %216
    %v218 = vsel %vm130, %v127, 0.0
    %219 = vadd.xlane.f32.xlu0 %v218
    %v220 = vpop.xlane.xlu0 %219
    %v221 = vsel %vm130, %v128, 0.0
    %222 = vadd.xlane.f32.xlu0 %v221
    %v223 = vpop.xlane.xlu0 %222
    %v224 = vsel %vm130, %v129, 0.0
    %225 = vadd.xlane.f32.xlu0 %v224
    %v226 = vpop.xlane.xlu0 %225
    %v228 = vsel %vm130, %v65, 0
    %v231 = vsel %vm130, %v66, 0
    %v234 = vsel %vm130, %v67, 0
    %v237 = vsel %vm130, %v68, 0
    %v240 = vsel %vm130, %v69, 0
    %v243 = vsel %vm130, %v70, 0
    %v246 = vsel %vm130, %v71, 0
    %v249 = vsel %vm130, %v72, 0
    %v252 = vsel %vm130, %v73, 0
    %v255 = vsel %vm130, %v74, 0
    %v258 = vsel %vm130, %v75, 0
    %v261 = vsel %vm130, %v76, 0
    %v264 = vsel %vm130, %v77, 0
    %v267 = vsel %vm130, %v78, 0
    %v270 = vsel %vm130, %v79, 0
    %v273 = vsel %vm130, %v80, 0
    %v276 = vsel %vm130, %v81, 0
    %v279 = vsel %vm130, %v82, 0
    %v282 = vsel %vm130, %v83, 0
    %v285 = vsel %vm130, %v84, 0
    %v288 = vsel %vm130, %v85, 0
    %v291 = vsel %vm130, %v86, 0
    %v294 = vsel %vm130, %v87, 0
    %v297 = vsel %vm130, %v88, 0
    %v300 = vsel %vm130, %v89, 0
    %v303 = vsel %vm130, %v90, 0
    %v306 = vsel %vm130, %v91, 0
    %v309 = vsel %vm130, %v92, 0
    %v312 = vsel %vm130, %v93, 0
    %v315 = vsel %vm130, %v94, 0
    %v318 = vsel %vm130, %v95, 0
    %v321 = vsel %vm130, %v96, 0
    %vm323 = vcmask 1042432
    %v325 = vsel %vm323, %v97, 0
    %327 = vmatprep.subr.mxu0 0.0
    %328 = vmatpush1.msra.mxu0 0.0
    %329 = vmatprep.subr.mxu0 0.0
    %330 = vmatpush1.msra.mxu0 0.0
    %331 = vmatprep.subr.mxu0 0.0
    %332 = vmatpush1.msra.mxu0 0.0
    %333 = vmatprep.subr.mxu0 0.0
    %334 = vmatpush1.msra.mxu0 0.0
    %335 = vmatprep.subr.mxu0 0.0
    %336 = vmatpush1.msra.mxu0 0.0
    %337 = vmatprep.subr.mxu0 0.0
    %338 = vmatpush1.msra.mxu0 0.0
    %339 = vmatprep.subr.mxu0 0.0
    %340 = vmatpush1.msra.mxu0 0.0
    %341 = vmatprep.subr.mxu0 0.0
    %342 = vmatpush1.msra.mxu0 0.0
    %343 = vmatprep.subr.mxu0 0.0
    %344 = vmatpush1.msra.mxu0 0.0
    %345 = vmatprep.subr.mxu0 0.0
    %346 = vmatpush1.msra.mxu0 0.0
    %347 = vmatprep.subr.mxu0 0.0
    %348 = vmatpush1.msra.mxu0 0.0
    %349 = vmatprep.subr.mxu0 0.0
    %350 = vmatpush1.msra.mxu0 0.0
    %351 = vmatprep.subr.mxu0 0.0
    %352 = vmatpush1.msra.mxu0 0.0
    %353 = vmatprep.subr.mxu0 0.0
    %354 = vmatpush1.msra.mxu0 0.0
    %355 = vmatprep.subr.mxu0 0.0
    %356 = vmatpush1.msra.mxu0 0.0
    %357 = vmatprep.subr.mxu0 0.0
    %358 = vmatpush1.msra.mxu0 %v325
    %359 = vmatprep.subr.mxu0 0.0
    %360 = vmatpush2.msra.mxu0 0.0
    %361 = vmatprep.subr.mxu0 0.0
    %362 = vmatpush2.msra.mxu0 0.0
    %363 = vmatprep.subr.mxu0 0.0
    %364 = vmatpush2.msra.mxu0 0.0
    %365 = vmatprep.subr.mxu0 0.0
    %366 = vmatpush2.msra.mxu0 0.0
    %367 = vmatprep.subr.mxu0 0.0
    %368 = vmatpush2.msra.mxu0 0.0
    %369 = vmatprep.subr.mxu0 0.0
    %370 = vmatpush2.msra.mxu0 0.0
    %371 = vmatprep.subr.mxu0 0.0
    %372 = vmatpush2.msra.mxu0 0.0
    %373 = vmatprep.subr.mxu0 0.0
    %374 = vmatpush2.msra.mxu0 0.0
    %375 = vmatprep.subr.mxu0 0.0
    %376 = vmatpush2.msra.mxu0 0.0
    %377 = vmatprep.subr.mxu0 0.0
    %378 = vmatpush2.msra.mxu0 0.0
    %379 = vmatprep.subr.mxu0 0.0
    %380 = vmatpush2.msra.mxu0 0.0
    %381 = vmatprep.subr.mxu0 0.0
    %382 = vmatpush2.msra.mxu0 0.0
    %383 = vmatprep.subr.mxu0 0.0
    %384 = vmatpush2.msra.mxu0 0.0
    %385 = vmatprep.subr.mxu0 0.0
    %386 = vmatpush2.msra.mxu0 0.0
    %387 = vmatprep.subr.mxu0 0.0
    %388 = vmatpush2.msra.mxu0 0.0
    %389 = vmatprep.subr.mxu0 0.0
    %390 = vmatpush2.msra.mxu0 0.0
    %391 = vmatprep.mubr.f32.mxu0 0.0
    %392 = vmatmul.mubr.f32.gmra.mxu0 %v228
    %v393 = vpop.f32.mrf.mxu0
    %v394 = vadd.f32 0.0, %v393
    %v395 = vpop.f32.mrf.mxu0
    %396 = vmatprep.mubr.f32.mxu0 0.0
    %397 = vmatmul.mubr.f32.gmra.mxu0 %v231
    %v398 = vpop.f32.mrf.mxu0
    %v399 = vadd.f32 0.0, %v398
    %v400 = vpop.f32.mrf.mxu0
    %401 = vmatprep.mubr.f32.mxu0 0.0
    %402 = vmatmul.mubr.f32.gmra.mxu0 %v234
    %v403 = vpop.f32.mrf.mxu0
    %v404 = vadd.f32 0.0, %v403
    %v405 = vpop.f32.mrf.mxu0
    %406 = vmatprep.mubr.f32.mxu0 0.0
    %407 = vmatmul.mubr.f32.gmra.mxu0 %v237
    %v408 = vpop.f32.mrf.mxu0
    %v409 = vadd.f32 0.0, %v408
    %v410 = vpop.f32.mrf.mxu0
    %411 = vmatprep.mubr.f32.mxu0 0.0
    %412 = vmatmul.mubr.f32.gmra.mxu0 %v240
    %v413 = vpop.f32.mrf.mxu0
    %v414 = vadd.f32 0.0, %v413
    %v415 = vpop.f32.mrf.mxu0
    %416 = vmatprep.mubr.f32.mxu0 0.0
    %417 = vmatmul.mubr.f32.gmra.mxu0 %v243
    %v418 = vpop.f32.mrf.mxu0
    %v419 = vadd.f32 0.0, %v418
    %v420 = vpop.f32.mrf.mxu0
    %421 = vmatprep.mubr.f32.mxu0 0.0
    %422 = vmatmul.mubr.f32.gmra.mxu0 %v246
    %v423 = vpop.f32.mrf.mxu0
    %v424 = vadd.f32 0.0, %v423
    %v425 = vpop.f32.mrf.mxu0
    %426 = vmatprep.mubr.f32.mxu0 0.0
    %427 = vmatmul.mubr.f32.gmra.mxu0 %v249
    %v428 = vpop.f32.mrf.mxu0
    %v429 = vadd.f32 0.0, %v428
    %v430 = vpop.f32.mrf.mxu0
    %431 = vmatprep.mubr.f32.mxu0 0.0
    %432 = vmatmul.mubr.f32.gmra.mxu0 %v252
    %v433 = vpop.f32.mrf.mxu0
    %v434 = vadd.f32 0.0, %v433
    %v435 = vpop.f32.mrf.mxu0
    %436 = vmatprep.mubr.f32.mxu0 0.0
    %437 = vmatmul.mubr.f32.gmra.mxu0 %v255
    %v438 = vpop.f32.mrf.mxu0
    %v439 = vadd.f32 0.0, %v438
    %v440 = vpop.f32.mrf.mxu0
    %441 = vmatprep.mubr.f32.mxu0 0.0
    %442 = vmatmul.mubr.f32.gmra.mxu0 %v258
    %v443 = vpop.f32.mrf.mxu0
    %v444 = vadd.f32 0.0, %v443
    %v445 = vpop.f32.mrf.mxu0
    %446 = vmatprep.mubr.f32.mxu0 0.0
    %447 = vmatmul.mubr.f32.gmra.mxu0 %v261
    %v448 = vpop.f32.mrf.mxu0
    %v449 = vadd.f32 0.0, %v448
    %v450 = vpop.f32.mrf.mxu0
    %451 = vmatprep.mubr.f32.mxu0 0.0
    %452 = vmatmul.mubr.f32.gmra.mxu0 %v264
    %v453 = vpop.f32.mrf.mxu0
    %v454 = vadd.f32 0.0, %v453
    %v455 = vpop.f32.mrf.mxu0
    %456 = vmatprep.mubr.f32.mxu0 0.0
    %457 = vmatmul.mubr.f32.gmra.mxu0 %v267
    %v458 = vpop.f32.mrf.mxu0
    %v459 = vadd.f32 0.0, %v458
    %v460 = vpop.f32.mrf.mxu0
    %461 = vmatprep.mubr.f32.mxu0 0.0
    %462 = vmatmul.mubr.f32.gmra.mxu0 %v270
    %v463 = vpop.f32.mrf.mxu0
    %v464 = vadd.f32 0.0, %v463
    %v465 = vpop.f32.mrf.mxu0
    %466 = vmatprep.mubr.f32.mxu0 0.0
    %467 = vmatmul.mubr.f32.gmra.mxu0 %v273
    %v468 = vpop.f32.mrf.mxu0
    %v469 = vadd.f32 0.0, %v468
    %v470 = vpop.f32.mrf.mxu0
    %471 = vmatprep.mubr.f32.mxu0 0.0
    %472 = vmatmul.mubr.f32.gmra.mxu0 %v276
    %v473 = vpop.f32.mrf.mxu0
    %v474 = vadd.f32 0.0, %v473
    %v475 = vpop.f32.mrf.mxu0
    %476 = vmatprep.mubr.f32.mxu0 0.0
    %477 = vmatmul.mubr.f32.gmra.mxu0 %v279
    %v478 = vpop.f32.mrf.mxu0
    %v479 = vadd.f32 0.0, %v478
    %v480 = vpop.f32.mrf.mxu0
    %481 = vmatprep.mubr.f32.mxu0 0.0
    %482 = vmatmul.mubr.f32.gmra.mxu0 %v282
    %v483 = vpop.f32.mrf.mxu0
    %v484 = vadd.f32 0.0, %v483
    %v485 = vpop.f32.mrf.mxu0
    %486 = vmatprep.mubr.f32.mxu0 0.0
    %487 = vmatmul.mubr.f32.gmra.mxu0 %v285
    %v488 = vpop.f32.mrf.mxu0
    %v489 = vadd.f32 0.0, %v488
    %v490 = vpop.f32.mrf.mxu0
    %491 = vmatprep.mubr.f32.mxu0 0.0
    %492 = vmatmul.mubr.f32.gmra.mxu0 %v288
    %v493 = vpop.f32.mrf.mxu0
    %v494 = vadd.f32 0.0, %v493
    %v495 = vpop.f32.mrf.mxu0
    %496 = vmatprep.mubr.f32.mxu0 0.0
    %497 = vmatmul.mubr.f32.gmra.mxu0 %v291
    %v498 = vpop.f32.mrf.mxu0
    %v499 = vadd.f32 0.0, %v498
    %v500 = vpop.f32.mrf.mxu0
    %501 = vmatprep.mubr.f32.mxu0 0.0
    %502 = vmatmul.mubr.f32.gmra.mxu0 %v294
    %v503 = vpop.f32.mrf.mxu0
    %v504 = vadd.f32 0.0, %v503
    %v505 = vpop.f32.mrf.mxu0
    %506 = vmatprep.mubr.f32.mxu0 0.0
    %507 = vmatmul.mubr.f32.gmra.mxu0 %v297
    %v508 = vpop.f32.mrf.mxu0
    %v509 = vadd.f32 0.0, %v508
    %v510 = vpop.f32.mrf.mxu0
    %511 = vmatprep.mubr.f32.mxu0 0.0
    %512 = vmatmul.mubr.f32.gmra.mxu0 %v300
    %v513 = vpop.f32.mrf.mxu0
    %v514 = vadd.f32 0.0, %v513
    %v515 = vpop.f32.mrf.mxu0
    %516 = vmatprep.mubr.f32.mxu0 0.0
    %517 = vmatmul.mubr.f32.gmra.mxu0 %v303
    %v518 = vpop.f32.mrf.mxu0
    %v519 = vadd.f32 0.0, %v518
    %v520 = vpop.f32.mrf.mxu0
    %521 = vmatprep.mubr.f32.mxu0 0.0
    %522 = vmatmul.mubr.f32.gmra.mxu0 %v306
    %v523 = vpop.f32.mrf.mxu0
    %v524 = vadd.f32 0.0, %v523
    %v525 = vpop.f32.mrf.mxu0
    %526 = vmatprep.mubr.f32.mxu0 0.0
    %527 = vmatmul.mubr.f32.gmra.mxu0 %v309
    %v528 = vpop.f32.mrf.mxu0
    %v529 = vadd.f32 0.0, %v528
    %v530 = vpop.f32.mrf.mxu0
    %531 = vmatprep.mubr.f32.mxu0 0.0
    %532 = vmatmul.mubr.f32.gmra.mxu0 %v312
    %v533 = vpop.f32.mrf.mxu0
    %v534 = vadd.f32 0.0, %v533
    %v535 = vpop.f32.mrf.mxu0
    %536 = vmatprep.mubr.f32.mxu0 0.0
    %537 = vmatmul.mubr.f32.gmra.mxu0 %v315
    %v538 = vpop.f32.mrf.mxu0
    %v539 = vadd.f32 0.0, %v538
    %v540 = vpop.f32.mrf.mxu0
    %541 = vmatprep.mubr.f32.mxu0 0.0
    %542 = vmatmul.mubr.f32.gmra.mxu0 %v318
    %v543 = vpop.f32.mrf.mxu0
    %v544 = vadd.f32 0.0, %v543
    %v545 = vpop.f32.mrf.mxu0
    %546 = vmatprep.mubr.f32.mxu0 0.0
    %547 = vmatmul.mubr.f32.gmra.mxu0 %v321
    %v548 = vpop.f32.mrf.mxu0
    %v549 = vadd.f32 0.0, %v548
    %v550 = vpop.f32.mrf.mxu0
    %551 = vdwg.mxu0
    %v552 = vmul.f32 %v97, %v97
    %v554 = vrot.slane %v552, 1
    %v556 = vadd.f32 %v552, %v554
    %v557 = vrot.slane %v552, 2
    %v559 = vadd.f32 %v556, %v557
    %v560 = vmul.f32 %v394, 2.0
    %v561 = vmul.f32 %v399, 2.0
    %v562 = vmul.f32 %v404, 2.0
    %v563 = vmul.f32 %v409, 2.0
    %v564 = vmul.f32 %v414, 2.0
    %v565 = vmul.f32 %v419, 2.0
    %v566 = vmul.f32 %v424, 2.0
    %v567 = vmul.f32 %v429, 2.0
    %v568 = vmul.f32 %v434, 2.0
    %v569 = vmul.f32 %v439, 2.0
    %v570 = vmul.f32 %v444, 2.0
    %v571 = vmul.f32 %v449, 2.0
    %v572 = vmul.f32 %v454, 2.0
    %v573 = vmul.f32 %v459, 2.0
    %v574 = vmul.f32 %v464, 2.0
    %v575 = vmul.f32 %v469, 2.0
    %v576 = vmul.f32 %v474, 2.0
    %v577 = vmul.f32 %v479, 2.0
    %v578 = vmul.f32 %v484, 2.0
    %v579 = vmul.f32 %v489, 2.0
    %v580 = vmul.f32 %v494, 2.0
    %v581 = vmul.f32 %v499, 2.0
    %v582 = vmul.f32 %v504, 2.0
    %v583 = vmul.f32 %v509, 2.0
    %v584 = vmul.f32 %v514, 2.0
    %v585 = vmul.f32 %v519, 2.0
    %v586 = vmul.f32 %v524, 2.0
    %v587 = vmul.f32 %v529, 2.0
    %v588 = vmul.f32 %v534, 2.0
    %v589 = vmul.f32 %v539, 2.0
    %v590 = vmul.f32 %v544, 2.0
    %v591 = vmul.f32 %v549, 2.0
    %v592 = vsub.f32 %v133, %v560
    %v593 = vsub.f32 %v136, %v561
    %v594 = vsub.f32 %v139, %v562
    %v595 = vsub.f32 %v142, %v563
    %v596 = vsub.f32 %v145, %v564
    %v597 = vsub.f32 %v148, %v565
    %v598 = vsub.f32 %v151, %v566
    %v599 = vsub.f32 %v154, %v567
    %v600 = vsub.f32 %v157, %v568
    %v601 = vsub.f32 %v160, %v569
    %v602 = vsub.f32 %v163, %v570
    %v603 = vsub.f32 %v166, %v571
    %v604 = vsub.f32 %v169, %v572
    %v605 = vsub.f32 %v172, %v573
    %v606 = vsub.f32 %v175, %v574
    %v607 = vsub.f32 %v178, %v575
    %v608 = vsub.f32 %v181, %v576
    %v609 = vsub.f32 %v184, %v577
    %v610 = vsub.f32 %v187, %v578
    %v611 = vsub.f32 %v190, %v579
    %v612 = vsub.f32 %v193, %v580
    %v613 = vsub.f32 %v196, %v581
    %v614 = vsub.f32 %v199, %v582
    %v615 = vsub.f32 %v202, %v583
    %v616 = vsub.f32 %v205, %v584
    %v617 = vsub.f32 %v208, %v585
    %v618 = vsub.f32 %v211, %v586
    %v619 = vsub.f32 %v214, %v587
    %v620 = vsub.f32 %v217, %v588
    %v621 = vsub.f32 %v220, %v589
    %v622 = vsub.f32 %v223, %v590
    %v623 = vsub.f32 %v226, %v591
    %v624 = vmin.f32 %v592, %v596
    %v625 = vmin.f32 %v593, %v597
    %v626 = vmin.f32 %v594, %v598
    %v627 = vmin.f32 %v595, %v599
    %v628 = vmin.f32 %v624, %v600
    %v629 = vmin.f32 %v625, %v601
    %v630 = vmin.f32 %v626, %v602
    %v631 = vmin.f32 %v627, %v603
    %v632 = vmin.f32 %v628, %v604
    %v633 = vmin.f32 %v629, %v605
    %v634 = vmin.f32 %v630, %v606
    %v635 = vmin.f32 %v631, %v607
    %v636 = vmin.f32 %v632, %v608
    %v637 = vmin.f32 %v633, %v609
    %v638 = vmin.f32 %v634, %v610
    %v639 = vmin.f32 %v635, %v611
    %v640 = vmin.f32 %v636, %v612
    %v641 = vmin.f32 %v637, %v613
    %v642 = vmin.f32 %v638, %v614
    %v643 = vmin.f32 %v639, %v615
    %v644 = vmin.f32 %v640, %v616
    %v645 = vmin.f32 %v641, %v617
    %v646 = vmin.f32 %v642, %v618
    %v647 = vmin.f32 %v643, %v619
    %v648 = vmin.f32 %v644, %v620
    %v649 = vmin.f32 %v645, %v621
    %v650 = vmin.f32 %v646, %v622
    %v651 = vmin.f32 %v647, %v623
    %v652 = vmin.f32 %v648, %v649
    %v653 = vmin.f32 %v650, %v651
    %v654 = vmin.f32 %v652, %v653
    %v655 = vrot.slane %v654, 4
    %v656 = vmin.f32 %v654, %v655
    %v657 = vrot.slane %v656, 2
    %v658 = vmin.f32 %v656, %v657
    %v659 = vrot.slane %v658, 1
    %v660 = vmin.f32 %v658, %v659
    %v661 = vadd.f32 %v660, %v559
    %v662 = vmax.f32 %v661, 0.0
    %v663 = vrsqrt.pop %v662
    %v664 = vmul.f32 %v662, %v663
    %vm665 = vcmp.eq.f32.partialorder %v662, inf
    %v666 = vsel %vm665, %v662, %v664
    %vm667 = vcmp.eq.f32.partialorder %v662, 0.0
    %v668 = vand.u32 %v662, 2147483648
    %v669 = vsel %vm667, %v668, %v666
    %v670 = vmul.f32 %v669, -30.0
    %v671 = vxor.u32 %v670, 2147483648
    %v672 = vmul.f32 %v671, 1.442695
    %v673 = vpow.pop %v672
    %v674 = vadd.f32 %v673, 1.0
    %v675 = vrcp.pop %v674
    %v676 = vmul.f32 1.0, %v675
    %v677 = vmul.f32 %v676, 2.0
    %v678 = vld [vmem:[%s2] sm:$0x7]
    %vm679 = vcmask 518144
    %v680 = vsel %vm679, %v678, 0.0
    %681 = vadd.xlane.f32.xlu0 %v680
    %v682 = vpop.xlane.xlu0 %681
    %v683 = vrcp.pop 64.0
    %v684 = vmul.f32 %v682, %v683
    %v685 = vsub.f32 %v678, %v684
    %v686 = vmul.f32 %v685, %v685
    %v688 = vrot.slane %v686, 1
    %v690 = vadd.f32 %v686, %v688
    %v691 = vrot.slane %v686, 2
    %v693 = vadd.f32 %v690, %v691
    %v694 = vrsqrt.pop %v693
    %v695 = vmul.f32 %v693, %v694
    %vm696 = vcmp.eq.f32.partialorder %v693, inf
    %v697 = vsel %vm696, %v693, %v695
    %vm698 = vcmp.eq.f32.partialorder %v693, 0.0
    %v699 = vand.u32 %v693, 2147483648
    %v700 = vsel %vm698, %v699, %v697
    %v701 = vadd.f32 %v700, 1e-08
    %v702 = vrcp.pop %v701
    %v703 = vmul.f32 1.0, %v702
    %v704 = vlaneseq
    %v705 = vshrl.u32 %v704, 7
    %v706 = vsub.s32 0, %v705
    %v707 = vrot.slane %v703, %v706
    %v708 = vmul.f32 %v685, %v707
    %v709 = vsel %vm679, %v708, 0.0
    %710 = vadd.xlane.f32.xlu0 %v709
    %v711 = vpop.xlane.xlu0 %710
    %v712 = vmul.f32 %v711, %v683
    %vm713 = vcmp.lt.s32.totalorder %v64, 64
    %v714 = vsel %vm713, %v677, 0.0
    %vm715 = vcmask 1040384
    %v716 = vsel %vm715, %v714, 0.0
    %717 = vadd.xlane.f32.xlu0 %v716
    %v718 = vpop.xlane.xlu0 %717
    %v719 = vmul.f32 %v718, %v683
    %v720 = vsel %vm713, 0.0, %v677
    %v721 = vsel %vm715, %v720, 0.0
    %722 = vadd.xlane.f32.xlu0 %v721
    %v723 = vpop.xlane.xlu0 %722
    %v724 = vmul.f32 %v723, %v683
    %v725 = vlaneseq
    %v726 = vshrl.u32 %v725, 7
    %v727 = vsub.s32 0, %v726
    %v728 = vrot.slane %v684, %v727
    %v729 = vmul.f32 %v51, %v728
    %v730 = vmul.f32 %v52, %v728
    %v731 = vmul.f32 %v53, %v728
    %v732 = vmul.f32 %v54, %v728
    %v733 = vadd.f32 %v59, %v729
    %v734 = vadd.f32 %v60, %v730
    %v735 = vadd.f32 %v61, %v731
    %v736 = vadd.f32 %v62, %v732
    %v737 = vlaneseq
    %v738 = vshrl.u32 %v737, 7
    %v739 = vsub.s32 0, %v738
    %v740 = vrot.slane %v712, %v739
    %v741 = vmul.f32 %v51, %v740
    %v742 = vmul.f32 %v52, %v740
    %v743 = vmul.f32 %v53, %v740
    %v744 = vmul.f32 %v54, %v740
    %749 = vrot.lane.b32.xlu0 %v741, 125
    %v750 = vpop.permute.xlu0 %749
    %751 = vrot.lane.b32.xlu0 %v742, 125
    %v752 = vpop.permute.xlu0 %751
    %753 = vrot.lane.b32.xlu0 %v743, 125
    %v754 = vpop.permute.xlu0 %753
    %755 = vrot.lane.b32.xlu0 %v744, 125
    %v756 = vpop.permute.xlu0 %755
    %v761 = vadd.f32 %v733, %v750
    %v762 = vadd.f32 %v734, %v752
    %v763 = vadd.f32 %v735, %v754
    %v764 = vadd.f32 %v736, %v756
    %v765 = vlaneseq
    %v766 = vshrl.u32 %v765, 7
    %v767 = vsub.s32 1, %v766
    %v768 = vrot.slane %v684, %v767
    %v769 = vmul.f32 %v51, %v768
    %v770 = vmul.f32 %v52, %v768
    %v771 = vmul.f32 %v53, %v768
    %v772 = vmul.f32 %v54, %v768
    %777 = vrot.lane.b32.xlu0 %v769, 127
    %v778 = vpop.permute.xlu0 %777
    %779 = vrot.lane.b32.xlu0 %v770, 127
    %v780 = vpop.permute.xlu0 %779
    %781 = vrot.lane.b32.xlu0 %v771, 127
    %v782 = vpop.permute.xlu0 %781
    %783 = vrot.lane.b32.xlu0 %v772, 127
    %v784 = vpop.permute.xlu0 %783
    %v789 = vadd.f32 %v761, %v778
    %v790 = vadd.f32 %v762, %v780
    %v791 = vadd.f32 %v763, %v782
    %v792 = vadd.f32 %v764, %v784
    %v793 = vlaneseq
    %v794 = vshrl.u32 %v793, 7
    %v795 = vsub.s32 1, %v794
    %v796 = vrot.slane %v712, %v795
    %v797 = vmul.f32 %v51, %v796
    %v798 = vmul.f32 %v52, %v796
    %v799 = vmul.f32 %v53, %v796
    %v800 = vmul.f32 %v54, %v796
    %805 = vrot.lane.b32.xlu0 %v797, 124
    %v806 = vpop.permute.xlu0 %805
    %807 = vrot.lane.b32.xlu0 %v798, 124
    %v808 = vpop.permute.xlu0 %807
    %809 = vrot.lane.b32.xlu0 %v799, 124
    %v810 = vpop.permute.xlu0 %809
    %811 = vrot.lane.b32.xlu0 %v800, 124
    %v812 = vpop.permute.xlu0 %811
    %v817 = vadd.f32 %v789, %v806
    %v818 = vadd.f32 %v790, %v808
    %v819 = vadd.f32 %v791, %v810
    %v820 = vadd.f32 %v792, %v812
    %v821 = vlaneseq
    %v822 = vshrl.u32 %v821, 7
    %v823 = vsub.s32 2, %v822
    %v824 = vrot.slane %v684, %v823
    %v825 = vmul.f32 %v51, %v824
    %v826 = vmul.f32 %v52, %v824
    %v827 = vmul.f32 %v53, %v824
    %v828 = vmul.f32 %v54, %v824
    %833 = vrot.lane.b32.xlu0 %v825, 126
    %v834 = vpop.permute.xlu0 %833
    %835 = vrot.lane.b32.xlu0 %v826, 126
    %v836 = vpop.permute.xlu0 %835
    %837 = vrot.lane.b32.xlu0 %v827, 126
    %v838 = vpop.permute.xlu0 %837
    %839 = vrot.lane.b32.xlu0 %v828, 126
    %v840 = vpop.permute.xlu0 %839
    %v845 = vadd.f32 %v817, %v834
    %v846 = vadd.f32 %v818, %v836
    %v847 = vadd.f32 %v819, %v838
    %v848 = vadd.f32 %v820, %v840
    %v849 = vlaneseq
    %v850 = vshrl.u32 %v849, 7
    %v851 = vsub.s32 2, %v850
    %v852 = vrot.slane %v712, %v851
    %v853 = vmul.f32 %v51, %v852
    %v854 = vmul.f32 %v52, %v852
    %v855 = vmul.f32 %v53, %v852
    %v856 = vmul.f32 %v54, %v852
    %861 = vrot.lane.b32.xlu0 %v853, 123
    %v862 = vpop.permute.xlu0 %861
    %863 = vrot.lane.b32.xlu0 %v854, 123
    %v864 = vpop.permute.xlu0 %863
    %865 = vrot.lane.b32.xlu0 %v855, 123
    %v866 = vpop.permute.xlu0 %865
    %867 = vrot.lane.b32.xlu0 %v856, 123
    %v868 = vpop.permute.xlu0 %867
    %v873 = vadd.f32 %v845, %v862
    %v874 = vadd.f32 %v846, %v864
    %v875 = vadd.f32 %v847, %v866
    %v876 = vadd.f32 %v848, %v868
    %v877 = vlaneseq
    %v878 = vshrl.u32 %v877, 7
    %v879 = vsub.s32 0, %v878
    %v880 = vrot.slane %v719, %v879
    %v881 = vmul.f32 %v51, %v880
    %v882 = vmul.f32 %v52, %v880
    %v883 = vmul.f32 %v53, %v880
    %v884 = vmul.f32 %v54, %v880
    %889 = vrot.lane.b32.xlu0 %v881, 122
    %v890 = vpop.permute.xlu0 %889
    %891 = vrot.lane.b32.xlu0 %v882, 122
    %v892 = vpop.permute.xlu0 %891
    %893 = vrot.lane.b32.xlu0 %v883, 122
    %v894 = vpop.permute.xlu0 %893
    %895 = vrot.lane.b32.xlu0 %v884, 122
    %v896 = vpop.permute.xlu0 %895
    %v901 = vadd.f32 %v873, %v890
    %v902 = vadd.f32 %v874, %v892
    %v903 = vadd.f32 %v875, %v894
    %v904 = vadd.f32 %v876, %v896
    %v905 = vlaneseq
    %v906 = vshrl.u32 %v905, 7
    %v907 = vsub.s32 0, %v906
    %v908 = vrot.slane %v724, %v907
    %v909 = vmul.f32 %v51, %v908
    %v910 = vmul.f32 %v52, %v908
    %v911 = vmul.f32 %v53, %v908
    %v912 = vmul.f32 %v54, %v908
    %917 = vrot.lane.b32.xlu0 %v909, 121
    %v918 = vpop.permute.xlu0 %917
    %919 = vrot.lane.b32.xlu0 %v910, 121
    %v920 = vpop.permute.xlu0 %919
    %921 = vrot.lane.b32.xlu0 %v911, 121
    %v922 = vpop.permute.xlu0 %921
    %923 = vrot.lane.b32.xlu0 %v912, 121
    %v924 = vpop.permute.xlu0 %923
    %v929 = vadd.f32 %v901, %v918
    %v930 = vadd.f32 %v902, %v920
    %v931 = vadd.f32 %v903, %v922
    %v932 = vadd.f32 %v904, %v924
    %vm933 = vcmp.ge.s32.totalorder %v64, 0
    %vm934 = vmand %vm933, %vm713
    %v935 = vsel %vm934, 1, 0
    %vm936 = vcmp.eq.s32.totalorder %v935, 1
    %938 = vset.pattern.permute.xlu0 0
    %939 = vperm.xlu0 %938, %v929
    %v940 = vpop.permute.xlu0 %939
    %943 = vset.pattern.permute.xlu0 0
    %944 = vperm.xlu0 %943, %v930
    %v945 = vpop.permute.xlu0 %944
    %948 = vset.pattern.permute.xlu0 0
    %949 = vperm.xlu0 %948, %v931
    %v950 = vpop.permute.xlu0 %949
    %953 = vset.pattern.permute.xlu0 0
    %954 = vperm.xlu0 %953, %v932
    %v955 = vpop.permute.xlu0 %954
    %v957 = vsel %vm936, %v940, 0.0
    %v958 = vsel %vm936, %v945, 0.0
    %v959 = vsel %vm936, %v950, 0.0
    %v960 = vsel %vm936, %v955, 0.0
    %s961 = sld [smem:[#allocation2]]
    %v962 = vstv %s961
    %v963 = vsel %vm934, %v962, 0.0
    %s964 = sld [smem:[#allocation2 + $0x80]]
    %v965 = vstv %s964
    %v966 = vsel %vm934, %v965, 0.0
    %s967 = sld [smem:[#allocation2 + $0x100]]
    %v968 = vstv %s967
    %v969 = vsel %vm934, %v968, 0.0
    %s970 = sld [smem:[#allocation2 + $0x180]]
    %v971 = vstv %s970
    %v972 = vsel %vm934, %v971, 0.0
    %s973 = scalar_lea.vmem %s0, 256
    %v974 = vld [vmem:[%s973] sm:$0xff]
    %v975 = vld [vmem:[%s973 + $0x8] sm:$0xff]
    %v976 = vld [vmem:[%s973 + $0x10] sm:$0xff]
    %v977 = vld [vmem:[%s973 + $0x18] sm:$0xff]
    %v978 = vld [vmem:[%s973 + $0x20] sm:$0xff]
    %v979 = vld [vmem:[%s973 + $0x28] sm:$0xff]
    %v980 = vld [vmem:[%s973 + $0x30] sm:$0xff]
    %v981 = vld [vmem:[%s973 + $0x38] sm:$0xff]
    %v982 = vld [vmem:[%s973 + $0x40] sm:$0xff]
    %v983 = vld [vmem:[%s973 + $0x48] sm:$0xff]
    %v984 = vld [vmem:[%s973 + $0x50] sm:$0xff]
    %v985 = vld [vmem:[%s973 + $0x58] sm:$0xff]
    %v986 = vld [vmem:[%s973 + $0x60] sm:$0xff]
    %v987 = vld [vmem:[%s973 + $0x68] sm:$0xff]
    %v988 = vld [vmem:[%s973 + $0x70] sm:$0xff]
    %v989 = vld [vmem:[%s973 + $0x78] sm:$0xff]
    %v990 = vld [vmem:[%s973 + $0x80] sm:$0xff]
    %v991 = vld [vmem:[%s973 + $0x88] sm:$0xff]
    %v992 = vld [vmem:[%s973 + $0x90] sm:$0xff]
    %v993 = vld [vmem:[%s973 + $0x98] sm:$0xff]
    %v994 = vld [vmem:[%s973 + $0xa0] sm:$0xff]
    %v995 = vld [vmem:[%s973 + $0xa8] sm:$0xff]
    %v996 = vld [vmem:[%s973 + $0xb0] sm:$0xff]
    %v997 = vld [vmem:[%s973 + $0xb8] sm:$0xff]
    %v998 = vld [vmem:[%s973 + $0xc0] sm:$0xff]
    %v999 = vld [vmem:[%s973 + $0xc8] sm:$0xff]
    %v1000 = vld [vmem:[%s973 + $0xd0] sm:$0xff]
    %v1001 = vld [vmem:[%s973 + $0xd8] sm:$0xff]
    %v1002 = vld [vmem:[%s973 + $0xe0] sm:$0xff]
    %v1003 = vld [vmem:[%s973 + $0xe8] sm:$0xff]
    %v1004 = vld [vmem:[%s973 + $0xf0] sm:$0xff]
    %v1005 = vld [vmem:[%s973 + $0xf8] sm:$0xff]
    %s1006 = scalar_lea.vmem %s1, 4
    %v1007 = vld [vmem:[%s1006] sm:$0x7]
    %v1008 = vmul.f32 %v974, %v974
    %v1009 = vmul.f32 %v975, %v975
    %v1010 = vmul.f32 %v976, %v976
    %v1011 = vmul.f32 %v977, %v977
    %v1012 = vmul.f32 %v978, %v978
    %v1013 = vmul.f32 %v979, %v979
    %v1014 = vmul.f32 %v980, %v980
    %v1015 = vmul.f32 %v981, %v981
    %v1016 = vmul.f32 %v982, %v982
    %v1017 = vmul.f32 %v983, %v983
    %v1018 = vmul.f32 %v984, %v984
    %v1019 = vmul.f32 %v985, %v985
    %v1020 = vmul.f32 %v986, %v986
    %v1021 = vmul.f32 %v987, %v987
    %v1022 = vmul.f32 %v988, %v988
    %v1023 = vmul.f32 %v989, %v989
    %v1024 = vmul.f32 %v990, %v990
    %v1025 = vmul.f32 %v991, %v991
    %v1026 = vmul.f32 %v992, %v992
    %v1027 = vmul.f32 %v993, %v993
    %v1028 = vmul.f32 %v994, %v994
    %v1029 = vmul.f32 %v995, %v995
    %v1030 = vmul.f32 %v996, %v996
    %v1031 = vmul.f32 %v997, %v997
    %v1032 = vmul.f32 %v998, %v998
    %v1033 = vmul.f32 %v999, %v999
    %v1034 = vmul.f32 %v1000, %v1000
    %v1035 = vmul.f32 %v1001, %v1001
    %v1036 = vmul.f32 %v1002, %v1002
    %v1037 = vmul.f32 %v1003, %v1003
    %v1038 = vmul.f32 %v1004, %v1004
    %v1039 = vmul.f32 %v1005, %v1005
    %v1040 = vsel %vm130, %v1008, 0.0
    %1041 = vadd.xlane.f32.xlu0 %v1040
    %v1042 = vpop.xlane.xlu0 %1041
    %v1043 = vsel %vm130, %v1009, 0.0
    %1044 = vadd.xlane.f32.xlu0 %v1043
    %v1045 = vpop.xlane.xlu0 %1044
    %v1046 = vsel %vm130, %v1010, 0.0
    %1047 = vadd.xlane.f32.xlu0 %v1046
    %v1048 = vpop.xlane.xlu0 %1047
    %v1049 = vsel %vm130, %v1011, 0.0
    %1050 = vadd.xlane.f32.xlu0 %v1049
    %v1051 = vpop.xlane.xlu0 %1050
    %v1052 = vsel %vm130, %v1012, 0.0
    %1053 = vadd.xlane.f32.xlu0 %v1052
    %v1054 = vpop.xlane.xlu0 %1053
    %v1055 = vsel %vm130, %v1013, 0.0
    %1056 = vadd.xlane.f32.xlu0 %v1055
    %v1057 = vpop.xlane.xlu0 %1056
    %v1058 = vsel %vm130, %v1014, 0.0
    %1059 = vadd.xlane.f32.xlu0 %v1058
    %v1060 = vpop.xlane.xlu0 %1059
    %v1061 = vsel %vm130, %v1015, 0.0
    %1062 = vadd.xlane.f32.xlu0 %v1061
    %v1063 = vpop.xlane.xlu0 %1062
    %v1064 = vsel %vm130, %v1016, 0.0
    %1065 = vadd.xlane.f32.xlu0 %v1064
    %v1066 = vpop.xlane.xlu0 %1065
    %v1067 = vsel %vm130, %v1017, 0.0
    %1068 = vadd.xlane.f32.xlu0 %v1067
    %v1069 = vpop.xlane.xlu0 %1068
    %v1070 = vsel %vm130, %v1018, 0.0
    %1071 = vadd.xlane.f32.xlu0 %v1070
    %v1072 = vpop.xlane.xlu0 %1071
    %v1073 = vsel %vm130, %v1019, 0.0
    %1074 = vadd.xlane.f32.xlu0 %v1073
    %v1075 = vpop.xlane.xlu0 %1074
    %v1076 = vsel %vm130, %v1020, 0.0
    %1077 = vadd.xlane.f32.xlu0 %v1076
    %v1078 = vpop.xlane.xlu0 %1077
    %v1079 = vsel %vm130, %v1021, 0.0
    %1080 = vadd.xlane.f32.xlu0 %v1079
    %v1081 = vpop.xlane.xlu0 %1080
    %v1082 = vsel %vm130, %v1022, 0.0
    %1083 = vadd.xlane.f32.xlu0 %v1082
    %v1084 = vpop.xlane.xlu0 %1083
    %v1085 = vsel %vm130, %v1023, 0.0
    %1086 = vadd.xlane.f32.xlu0 %v1085
    %v1087 = vpop.xlane.xlu0 %1086
    %v1088 = vsel %vm130, %v1024, 0.0
    %1089 = vadd.xlane.f32.xlu0 %v1088
    %v1090 = vpop.xlane.xlu0 %1089
    %v1091 = vsel %vm130, %v1025, 0.0
    %1092 = vadd.xlane.f32.xlu0 %v1091
    %v1093 = vpop.xlane.xlu0 %1092
    %v1094 = vsel %vm130, %v1026, 0.0
    %1095 = vadd.xlane.f32.xlu0 %v1094
    %v1096 = vpop.xlane.xlu0 %1095
    %v1097 = vsel %vm130, %v1027, 0.0
    %1098 = vadd.xlane.f32.xlu0 %v1097
    %v1099 = vpop.xlane.xlu0 %1098
    %v1100 = vsel %vm130, %v1028, 0.0
    %1101 = vadd.xlane.f32.xlu0 %v1100
    %v1102 = vpop.xlane.xlu0 %1101
    %v1103 = vsel %vm130, %v1029, 0.0
    %1104 = vadd.xlane.f32.xlu0 %v1103
    %v1105 = vpop.xlane.xlu0 %1104
    %v1106 = vsel %vm130, %v1030, 0.0
    %1107 = vadd.xlane.f32.xlu0 %v1106
    %v1108 = vpop.xlane.xlu0 %1107
    %v1109 = vsel %vm130, %v1031, 0.0
    %1110 = vadd.xlane.f32.xlu0 %v1109
    %v1111 = vpop.xlane.xlu0 %1110
    %v1112 = vsel %vm130, %v1032, 0.0
    %1113 = vadd.xlane.f32.xlu0 %v1112
    %v1114 = vpop.xlane.xlu0 %1113
    %v1115 = vsel %vm130, %v1033, 0.0
    %1116 = vadd.xlane.f32.xlu0 %v1115
    %v1117 = vpop.xlane.xlu0 %1116
    %v1118 = vsel %vm130, %v1034, 0.0
    %1119 = vadd.xlane.f32.xlu0 %v1118
    %v1120 = vpop.xlane.xlu0 %1119
    %v1121 = vsel %vm130, %v1035, 0.0
    %1122 = vadd.xlane.f32.xlu0 %v1121
    %v1123 = vpop.xlane.xlu0 %1122
    %v1124 = vsel %vm130, %v1036, 0.0
    %1125 = vadd.xlane.f32.xlu0 %v1124
    %v1126 = vpop.xlane.xlu0 %1125
    %v1127 = vsel %vm130, %v1037, 0.0
    %1128 = vadd.xlane.f32.xlu0 %v1127
    %v1129 = vpop.xlane.xlu0 %1128
    %v1130 = vsel %vm130, %v1038, 0.0
    %1131 = vadd.xlane.f32.xlu0 %v1130
    %v1132 = vpop.xlane.xlu0 %1131
    %v1133 = vsel %vm130, %v1039, 0.0
    %1134 = vadd.xlane.f32.xlu0 %v1133
    %v1135 = vpop.xlane.xlu0 %1134
    %v1137 = vsel %vm130, %v974, 0
    %v1140 = vsel %vm130, %v975, 0
    %v1143 = vsel %vm130, %v976, 0
    %v1146 = vsel %vm130, %v977, 0
    %v1149 = vsel %vm130, %v978, 0
    %v1152 = vsel %vm130, %v979, 0
    %v1155 = vsel %vm130, %v980, 0
    %v1158 = vsel %vm130, %v981, 0
    %v1161 = vsel %vm130, %v982, 0
    %v1164 = vsel %vm130, %v983, 0
    %v1167 = vsel %vm130, %v984, 0
    %v1170 = vsel %vm130, %v985, 0
    %v1173 = vsel %vm130, %v986, 0
    %v1176 = vsel %vm130, %v987, 0
    %v1179 = vsel %vm130, %v988, 0
    %v1182 = vsel %vm130, %v989, 0
    %v1185 = vsel %vm130, %v990, 0
    %v1188 = vsel %vm130, %v991, 0
    %v1191 = vsel %vm130, %v992, 0
    %v1194 = vsel %vm130, %v993, 0
    %v1197 = vsel %vm130, %v994, 0
    %v1200 = vsel %vm130, %v995, 0
    %v1203 = vsel %vm130, %v996, 0
    %v1206 = vsel %vm130, %v997, 0
    %v1209 = vsel %vm130, %v998, 0
    %v1212 = vsel %vm130, %v999, 0
    %v1215 = vsel %vm130, %v1000, 0
    %v1218 = vsel %vm130, %v1001, 0
    %v1221 = vsel %vm130, %v1002, 0
    %v1224 = vsel %vm130, %v1003, 0
    %v1227 = vsel %vm130, %v1004, 0
    %v1230 = vsel %vm130, %v1005, 0
    %v1233 = vsel %vm323, %v1007, 0
    %1235 = vmatprep.subr.mxu0 0.0
    %1236 = vmatpush1.msra.mxu0 0.0
    %1237 = vmatprep.subr.mxu0 0.0
    %1238 = vmatpush1.msra.mxu0 0.0
    %1239 = vmatprep.subr.mxu0 0.0
    %1240 = vmatpush1.msra.mxu0 0.0
    %1241 = vmatprep.subr.mxu0 0.0
    %1242 = vmatpush1.msra.mxu0 0.0
    %1243 = vmatprep.subr.mxu0 0.0
    %1244 = vmatpush1.msra.mxu0 0.0
    %1245 = vmatprep.subr.mxu0 0.0
    %1246 = vmatpush1.msra.mxu0 0.0
    %1247 = vmatprep.subr.mxu0 0.0
    %1248 = vmatpush1.msra.mxu0 0.0
    %1249 = vmatprep.subr.mxu0 0.0
    %1250 = vmatpush1.msra.mxu0 0.0
    %1251 = vmatprep.subr.mxu0 0.0
    %1252 = vmatpush1.msra.mxu0 0.0
    %1253 = vmatprep.subr.mxu0 0.0
    %1254 = vmatpush1.msra.mxu0 0.0
    %1255 = vmatprep.subr.mxu0 0.0
    %1256 = vmatpush1.msra.mxu0 0.0
    %1257 = vmatprep.subr.mxu0 0.0
    %1258 = vmatpush1.msra.mxu0 0.0
    %1259 = vmatprep.subr.mxu0 0.0
    %1260 = vmatpush1.msra.mxu0 0.0
    %1261 = vmatprep.subr.mxu0 0.0
    %1262 = vmatpush1.msra.mxu0 0.0
    %1263 = vmatprep.subr.mxu0 0.0
    %1264 = vmatpush1.msra.mxu0 0.0
    %1265 = vmatprep.subr.mxu0 0.0
    %1266 = vmatpush1.msra.mxu0 %v1233
    %1267 = vmatprep.subr.mxu0 0.0
    %1268 = vmatpush2.msra.mxu0 0.0
    %1269 = vmatprep.subr.mxu0 0.0
    %1270 = vmatpush2.msra.mxu0 0.0
    %1271 = vmatprep.subr.mxu0 0.0
    %1272 = vmatpush2.msra.mxu0 0.0
    %1273 = vmatprep.subr.mxu0 0.0
    %1274 = vmatpush2.msra.mxu0 0.0
    %1275 = vmatprep.subr.mxu0 0.0
    %1276 = vmatpush2.msra.mxu0 0.0
    %1277 = vmatprep.subr.mxu0 0.0
    %1278 = vmatpush2.msra.mxu0 0.0
    %1279 = vmatprep.subr.mxu0 0.0
    %1280 = vmatpush2.msra.mxu0 0.0
    %1281 = vmatprep.subr.mxu0 0.0
    %1282 = vmatpush2.msra.mxu0 0.0
    %1283 = vmatprep.subr.mxu0 0.0
    %1284 = vmatpush2.msra.mxu0 0.0
    %1285 = vmatprep.subr.mxu0 0.0
    %1286 = vmatpush2.msra.mxu0 0.0
    %1287 = vmatprep.subr.mxu0 0.0
    %1288 = vmatpush2.msra.mxu0 0.0
    %1289 = vmatprep.subr.mxu0 0.0
    %1290 = vmatpush2.msra.mxu0 0.0
    %1291 = vmatprep.subr.mxu0 0.0
    %1292 = vmatpush2.msra.mxu0 0.0
    %1293 = vmatprep.subr.mxu0 0.0
    %1294 = vmatpush2.msra.mxu0 0.0
    %1295 = vmatprep.subr.mxu0 0.0
    %1296 = vmatpush2.msra.mxu0 0.0
    %1297 = vmatprep.subr.mxu0 0.0
    %1298 = vmatpush2.msra.mxu0 0.0
    %1299 = vmatprep.mubr.f32.mxu0 0.0
    %1300 = vmatmul.mubr.f32.gmra.mxu0 %v1137
    %v1301 = vpop.f32.mrf.mxu0
    %v1302 = vadd.f32 0.0, %v1301
    %v1303 = vpop.f32.mrf.mxu0
    %1304 = vmatprep.mubr.f32.mxu0 0.0
    %1305 = vmatmul.mubr.f32.gmra.mxu0 %v1140
    %v1306 = vpop.f32.mrf.mxu0
    %v1307 = vadd.f32 0.0, %v1306
    %v1308 = vpop.f32.mrf.mxu0
    %1309 = vmatprep.mubr.f32.mxu0 0.0
    %1310 = vmatmul.mubr.f32.gmra.mxu0 %v1143
    %v1311 = vpop.f32.mrf.mxu0
    %v1312 = vadd.f32 0.0, %v1311
    %v1313 = vpop.f32.mrf.mxu0
    %1314 = vmatprep.mubr.f32.mxu0 0.0
    %1315 = vmatmul.mubr.f32.gmra.mxu0 %v1146
    %v1316 = vpop.f32.mrf.mxu0
    %v1317 = vadd.f32 0.0, %v1316
    %v1318 = vpop.f32.mrf.mxu0
    %1319 = vmatprep.mubr.f32.mxu0 0.0
    %1320 = vmatmul.mubr.f32.gmra.mxu0 %v1149
    %v1321 = vpop.f32.mrf.mxu0
    %v1322 = vadd.f32 0.0, %v1321
    %v1323 = vpop.f32.mrf.mxu0
    %1324 = vmatprep.mubr.f32.mxu0 0.0
    %1325 = vmatmul.mubr.f32.gmra.mxu0 %v1152
    %v1326 = vpop.f32.mrf.mxu0
    %v1327 = vadd.f32 0.0, %v1326
    %v1328 = vpop.f32.mrf.mxu0
    %1329 = vmatprep.mubr.f32.mxu0 0.0
    %1330 = vmatmul.mubr.f32.gmra.mxu0 %v1155
    %v1331 = vpop.f32.mrf.mxu0
    %v1332 = vadd.f32 0.0, %v1331
    %v1333 = vpop.f32.mrf.mxu0
    %1334 = vmatprep.mubr.f32.mxu0 0.0
    %1335 = vmatmul.mubr.f32.gmra.mxu0 %v1158
    %v1336 = vpop.f32.mrf.mxu0
    %v1337 = vadd.f32 0.0, %v1336
    %v1338 = vpop.f32.mrf.mxu0
    %1339 = vmatprep.mubr.f32.mxu0 0.0
    %1340 = vmatmul.mubr.f32.gmra.mxu0 %v1161
    %v1341 = vpop.f32.mrf.mxu0
    %v1342 = vadd.f32 0.0, %v1341
    %v1343 = vpop.f32.mrf.mxu0
    %1344 = vmatprep.mubr.f32.mxu0 0.0
    %1345 = vmatmul.mubr.f32.gmra.mxu0 %v1164
    %v1346 = vpop.f32.mrf.mxu0
    %v1347 = vadd.f32 0.0, %v1346
    %v1348 = vpop.f32.mrf.mxu0
    %1349 = vmatprep.mubr.f32.mxu0 0.0
    %1350 = vmatmul.mubr.f32.gmra.mxu0 %v1167
    %v1351 = vpop.f32.mrf.mxu0
    %v1352 = vadd.f32 0.0, %v1351
    %v1353 = vpop.f32.mrf.mxu0
    %1354 = vmatprep.mubr.f32.mxu0 0.0
    %1355 = vmatmul.mubr.f32.gmra.mxu0 %v1170
    %v1356 = vpop.f32.mrf.mxu0
    %v1357 = vadd.f32 0.0, %v1356
    %v1358 = vpop.f32.mrf.mxu0
    %1359 = vmatprep.mubr.f32.mxu0 0.0
    %1360 = vmatmul.mubr.f32.gmra.mxu0 %v1173
    %v1361 = vpop.f32.mrf.mxu0
    %v1362 = vadd.f32 0.0, %v1361
    %v1363 = vpop.f32.mrf.mxu0
    %1364 = vmatprep.mubr.f32.mxu0 0.0
    %1365 = vmatmul.mubr.f32.gmra.mxu0 %v1176
    %v1366 = vpop.f32.mrf.mxu0
    %v1367 = vadd.f32 0.0, %v1366
    %v1368 = vpop.f32.mrf.mxu0
    %1369 = vmatprep.mubr.f32.mxu0 0.0
    %1370 = vmatmul.mubr.f32.gmra.mxu0 %v1179
    %v1371 = vpop.f32.mrf.mxu0
    %v1372 = vadd.f32 0.0, %v1371
    %v1373 = vpop.f32.mrf.mxu0
    %1374 = vmatprep.mubr.f32.mxu0 0.0
    %1375 = vmatmul.mubr.f32.gmra.mxu0 %v1182
    %v1376 = vpop.f32.mrf.mxu0
    %v1377 = vadd.f32 0.0, %v1376
    %v1378 = vpop.f32.mrf.mxu0
    %1379 = vmatprep.mubr.f32.mxu0 0.0
    %1380 = vmatmul.mubr.f32.gmra.mxu0 %v1185
    %v1381 = vpop.f32.mrf.mxu0
    %v1382 = vadd.f32 0.0, %v1381
    %v1383 = vpop.f32.mrf.mxu0
    %1384 = vmatprep.mubr.f32.mxu0 0.0
    %1385 = vmatmul.mubr.f32.gmra.mxu0 %v1188
    %v1386 = vpop.f32.mrf.mxu0
    %v1387 = vadd.f32 0.0, %v1386
    %v1388 = vpop.f32.mrf.mxu0
    %1389 = vmatprep.mubr.f32.mxu0 0.0
    %1390 = vmatmul.mubr.f32.gmra.mxu0 %v1191
    %v1391 = vpop.f32.mrf.mxu0
    %v1392 = vadd.f32 0.0, %v1391
    %v1393 = vpop.f32.mrf.mxu0
    %1394 = vmatprep.mubr.f32.mxu0 0.0
    %1395 = vmatmul.mubr.f32.gmra.mxu0 %v1194
    %v1396 = vpop.f32.mrf.mxu0
    %v1397 = vadd.f32 0.0, %v1396
    %v1398 = vpop.f32.mrf.mxu0
    %1399 = vmatprep.mubr.f32.mxu0 0.0
    %1400 = vmatmul.mubr.f32.gmra.mxu0 %v1197
    %v1401 = vpop.f32.mrf.mxu0
    %v1402 = vadd.f32 0.0, %v1401
    %v1403 = vpop.f32.mrf.mxu0
    %1404 = vmatprep.mubr.f32.mxu0 0.0
    %1405 = vmatmul.mubr.f32.gmra.mxu0 %v1200
    %v1406 = vpop.f32.mrf.mxu0
    %v1407 = vadd.f32 0.0, %v1406
    %v1408 = vpop.f32.mrf.mxu0
    %1409 = vmatprep.mubr.f32.mxu0 0.0
    %1410 = vmatmul.mubr.f32.gmra.mxu0 %v1203
    %v1411 = vpop.f32.mrf.mxu0
    %v1412 = vadd.f32 0.0, %v1411
    %v1413 = vpop.f32.mrf.mxu0
    %1414 = vmatprep.mubr.f32.mxu0 0.0
    %1415 = vmatmul.mubr.f32.gmra.mxu0 %v1206
    %v1416 = vpop.f32.mrf.mxu0
    %v1417 = vadd.f32 0.0, %v1416
    %v1418 = vpop.f32.mrf.mxu0
    %1419 = vmatprep.mubr.f32.mxu0 0.0
    %1420 = vmatmul.mubr.f32.gmra.mxu0 %v1209
    %v1421 = vpop.f32.mrf.mxu0
    %v1422 = vadd.f32 0.0, %v1421
    %v1423 = vpop.f32.mrf.mxu0
    %1424 = vmatprep.mubr.f32.mxu0 0.0
    %1425 = vmatmul.mubr.f32.gmra.mxu0 %v1212
    %v1426 = vpop.f32.mrf.mxu0
    %v1427 = vadd.f32 0.0, %v1426
    %v1428 = vpop.f32.mrf.mxu0
    %1429 = vmatprep.mubr.f32.mxu0 0.0
    %1430 = vmatmul.mubr.f32.gmra.mxu0 %v1215
    %v1431 = vpop.f32.mrf.mxu0
    %v1432 = vadd.f32 0.0, %v1431
    %v1433 = vpop.f32.mrf.mxu0
    %1434 = vmatprep.mubr.f32.mxu0 0.0
    %1435 = vmatmul.mubr.f32.gmra.mxu0 %v1218
    %v1436 = vpop.f32.mrf.mxu0
    %v1437 = vadd.f32 0.0, %v1436
    %v1438 = vpop.f32.mrf.mxu0
    %1439 = vmatprep.mubr.f32.mxu0 0.0
    %1440 = vmatmul.mubr.f32.gmra.mxu0 %v1221
    %v1441 = vpop.f32.mrf.mxu0
    %v1442 = vadd.f32 0.0, %v1441
    %v1443 = vpop.f32.mrf.mxu0
    %1444 = vmatprep.mubr.f32.mxu0 0.0
    %1445 = vmatmul.mubr.f32.gmra.mxu0 %v1224
    %v1446 = vpop.f32.mrf.mxu0
    %v1447 = vadd.f32 0.0, %v1446
    %v1448 = vpop.f32.mrf.mxu0
    %1449 = vmatprep.mubr.f32.mxu0 0.0
    %1450 = vmatmul.mubr.f32.gmra.mxu0 %v1227
    %v1451 = vpop.f32.mrf.mxu0
    %v1452 = vadd.f32 0.0, %v1451
    %v1453 = vpop.f32.mrf.mxu0
    %1454 = vmatprep.mubr.f32.mxu0 0.0
    %1455 = vmatmul.mubr.f32.gmra.mxu0 %v1230
    %v1456 = vpop.f32.mrf.mxu0
    %v1457 = vadd.f32 0.0, %v1456
    %v1458 = vpop.f32.mrf.mxu0
    %1459 = vdwg.mxu0
    %v1460 = vmul.f32 %v1007, %v1007
    %v1462 = vrot.slane %v1460, 1
    %v1464 = vadd.f32 %v1460, %v1462
    %v1465 = vrot.slane %v1460, 2
    %v1467 = vadd.f32 %v1464, %v1465
    %v1468 = vmul.f32 %v1302, 2.0
    %v1469 = vmul.f32 %v1307, 2.0
    %v1470 = vmul.f32 %v1312, 2.0
    %v1471 = vmul.f32 %v1317, 2.0
    %v1472 = vmul.f32 %v1322, 2.0
    %v1473 = vmul.f32 %v1327, 2.0
    %v1474 = vmul.f32 %v1332, 2.0
    %v1475 = vmul.f32 %v1337, 2.0
    %v1476 = vmul.f32 %v1342, 2.0
    %v1477 = vmul.f32 %v1347, 2.0
    %v1478 = vmul.f32 %v1352, 2.0
    %v1479 = vmul.f32 %v1357, 2.0
    %v1480 = vmul.f32 %v1362, 2.0
    %v1481 = vmul.f32 %v1367, 2.0
    %v1482 = vmul.f32 %v1372, 2.0
    %v1483 = vmul.f32 %v1377, 2.0
    %v1484 = vmul.f32 %v1382, 2.0
    %v1485 = vmul.f32 %v1387, 2.0
    %v1486 = vmul.f32 %v1392, 2.0
    %v1487 = vmul.f32 %v1397, 2.0
    %v1488 = vmul.f32 %v1402, 2.0
    %v1489 = vmul.f32 %v1407, 2.0
    %v1490 = vmul.f32 %v1412, 2.0
    %v1491 = vmul.f32 %v1417, 2.0
    %v1492 = vmul.f32 %v1422, 2.0
    %v1493 = vmul.f32 %v1427, 2.0
    %v1494 = vmul.f32 %v1432, 2.0
    %v1495 = vmul.f32 %v1437, 2.0
    %v1496 = vmul.f32 %v1442, 2.0
    %v1497 = vmul.f32 %v1447, 2.0
    %v1498 = vmul.f32 %v1452, 2.0
    %v1499 = vmul.f32 %v1457, 2.0
    %v1500 = vsub.f32 %v1042, %v1468
    %v1501 = vsub.f32 %v1045, %v1469
    %v1502 = vsub.f32 %v1048, %v1470
    %v1503 = vsub.f32 %v1051, %v1471
    %v1504 = vsub.f32 %v1054, %v1472
    %v1505 = vsub.f32 %v1057, %v1473
    %v1506 = vsub.f32 %v1060, %v1474
    %v1507 = vsub.f32 %v1063, %v1475
    %v1508 = vsub.f32 %v1066, %v1476
    %v1509 = vsub.f32 %v1069, %v1477
    %v1510 = vsub.f32 %v1072, %v1478
    %v1511 = vsub.f32 %v1075, %v1479
    %v1512 = vsub.f32 %v1078, %v1480
    %v1513 = vsub.f32 %v1081, %v1481
    %v1514 = vsub.f32 %v1084, %v1482
    %v1515 = vsub.f32 %v1087, %v1483
    %v1516 = vsub.f32 %v1090, %v1484
    %v1517 = vsub.f32 %v1093, %v1485
    %v1518 = vsub.f32 %v1096, %v1486
    %v1519 = vsub.f32 %v1099, %v1487
    %v1520 = vsub.f32 %v1102, %v1488
    %v1521 = vsub.f32 %v1105, %v1489
    %v1522 = vsub.f32 %v1108, %v1490
    %v1523 = vsub.f32 %v1111, %v1491
    %v1524 = vsub.f32 %v1114, %v1492
    %v1525 = vsub.f32 %v1117, %v1493
    %v1526 = vsub.f32 %v1120, %v1494
    %v1527 = vsub.f32 %v1123, %v1495
    %v1528 = vsub.f32 %v1126, %v1496
    %v1529 = vsub.f32 %v1129, %v1497
    %v1530 = vsub.f32 %v1132, %v1498
    %v1531 = vsub.f32 %v1135, %v1499
    %v1532 = vmin.f32 %v1500, %v1504
    %v1533 = vmin.f32 %v1501, %v1505
    %v1534 = vmin.f32 %v1502, %v1506
    %v1535 = vmin.f32 %v1503, %v1507
    %v1536 = vmin.f32 %v1532, %v1508
    %v1537 = vmin.f32 %v1533, %v1509
    %v1538 = vmin.f32 %v1534, %v1510
    %v1539 = vmin.f32 %v1535, %v1511
    %v1540 = vmin.f32 %v1536, %v1512
    %v1541 = vmin.f32 %v1537, %v1513
    %v1542 = vmin.f32 %v1538, %v1514
    %v1543 = vmin.f32 %v1539, %v1515
    %v1544 = vmin.f32 %v1540, %v1516
    %v1545 = vmin.f32 %v1541, %v1517
    %v1546 = vmin.f32 %v1542, %v1518
    %v1547 = vmin.f32 %v1543, %v1519
    %v1548 = vmin.f32 %v1544, %v1520
    %v1549 = vmin.f32 %v1545, %v1521
    %v1550 = vmin.f32 %v1546, %v1522
    %v1551 = vmin.f32 %v1547, %v1523
    %v1552 = vmin.f32 %v1548, %v1524
    %v1553 = vmin.f32 %v1549, %v1525
    %v1554 = vmin.f32 %v1550, %v1526
    %v1555 = vmin.f32 %v1551, %v1527
    %v1556 = vmin.f32 %v1552, %v1528
    %v1557 = vmin.f32 %v1553, %v1529
    %v1558 = vmin.f32 %v1554, %v1530
    %v1559 = vmin.f32 %v1555, %v1531
    %v1560 = vmin.f32 %v1556, %v1557
    %v1561 = vmin.f32 %v1558, %v1559
    %v1562 = vmin.f32 %v1560, %v1561
    %v1563 = vrot.slane %v1562, 4
    %v1564 = vmin.f32 %v1562, %v1563
    %v1565 = vrot.slane %v1564, 2
    %v1566 = vmin.f32 %v1564, %v1565
    %v1567 = vrot.slane %v1566, 1
    %v1568 = vmin.f32 %v1566, %v1567
    %v1569 = vadd.f32 %v1568, %v1467
    %v1570 = vmax.f32 %v1569, 0.0
    %v1571 = vrsqrt.pop %v1570
    %v1572 = vmul.f32 %v1570, %v1571
    %vm1573 = vcmp.eq.f32.partialorder %v1570, inf
    %v1574 = vsel %vm1573, %v1570, %v1572
    %vm1575 = vcmp.eq.f32.partialorder %v1570, 0.0
    %v1576 = vand.u32 %v1570, 2147483648
    %v1577 = vsel %vm1575, %v1576, %v1574
    %v1578 = vmul.f32 %v1577, -30.0
    %v1579 = vxor.u32 %v1578, 2147483648
    %v1580 = vmul.f32 %v1579, 1.442695
    %v1581 = vpow.pop %v1580
    %v1582 = vadd.f32 %v1581, 1.0
    %v1583 = vrcp.pop %v1582
    %v1584 = vmul.f32 1.0, %v1583
    %v1585 = vmul.f32 %v1584, 2.0
    %s1586 = scalar_lea.vmem %s2, 4
    %v1587 = vld [vmem:[%s1586] sm:$0x7]
    %v1588 = vsel %vm679, %v1587, 0.0
    %1589 = vadd.xlane.f32.xlu0 %v1588
    %v1590 = vpop.xlane.xlu0 %1589
    %v1591 = vmul.f32 %v1590, %v683
    %v1592 = vsub.f32 %v1587, %v1591
    %v1593 = vmul.f32 %v1592, %v1592
    %v1595 = vrot.slane %v1593, 1
    %v1597 = vadd.f32 %v1593, %v1595
    %v1598 = vrot.slane %v1593, 2
    %v1600 = vadd.f32 %v1597, %v1598
    %v1601 = vrsqrt.pop %v1600
    %v1602 = vmul.f32 %v1600, %v1601
    %vm1603 = vcmp.eq.f32.partialorder %v1600, inf
    %v1604 = vsel %vm1603, %v1600, %v1602
    %vm1605 = vcmp.eq.f32.partialorder %v1600, 0.0
    %v1606 = vand.u32 %v1600, 2147483648
    %v1607 = vsel %vm1605, %v1606, %v1604
    %v1608 = vadd.f32 %v1607, 1e-08
    %v1609 = vrcp.pop %v1608
    %v1610 = vmul.f32 1.0, %v1609
    %v1611 = vlaneseq
    %v1612 = vshrl.u32 %v1611, 7
    %v1613 = vsub.s32 0, %v1612
    %v1614 = vrot.slane %v1610, %v1613
    %v1615 = vmul.f32 %v1592, %v1614
    %v1616 = vsel %vm679, %v1615, 0.0
    %1617 = vadd.xlane.f32.xlu0 %v1616
    %v1618 = vpop.xlane.xlu0 %1617
    %v1619 = vmul.f32 %v1618, %v683
    %v1620 = vsel %vm713, %v1585, 0.0
    %v1621 = vsel %vm715, %v1620, 0.0
    %1622 = vadd.xlane.f32.xlu0 %v1621
    %v1623 = vpop.xlane.xlu0 %1622
    %v1624 = vmul.f32 %v1623, %v683
    %v1625 = vsel %vm713, 0.0, %v1585
    %v1626 = vsel %vm715, %v1625, 0.0
    %1627 = vadd.xlane.f32.xlu0 %v1626
    %v1628 = vpop.xlane.xlu0 %1627
    %v1629 = vmul.f32 %v1628, %v683
    %v1630 = vlaneseq
    %v1631 = vshrl.u32 %v1630, 7
    %v1632 = vsub.s32 0, %v1631
    %v1633 = vrot.slane %v1591, %v1632
    %v1634 = vmul.f32 %v51, %v1633
    %v1635 = vmul.f32 %v52, %v1633
    %v1636 = vmul.f32 %v53, %v1633
    %v1637 = vmul.f32 %v54, %v1633
    %1642 = vrot.lane.b32.xlu0 %v1634, 1
    %v1643 = vpop.permute.xlu0 %1642
    %1644 = vrot.lane.b32.xlu0 %v1635, 1
    %v1645 = vpop.permute.xlu0 %1644
    %1646 = vrot.lane.b32.xlu0 %v1636, 1
    %v1647 = vpop.permute.xlu0 %1646
    %1648 = vrot.lane.b32.xlu0 %v1637, 1
    %v1649 = vpop.permute.xlu0 %1648
    %v1654 = vadd.f32 %v59, %v1643
    %v1655 = vadd.f32 %v60, %v1645
    %v1656 = vadd.f32 %v61, %v1647
    %v1657 = vadd.f32 %v62, %v1649
    %v1658 = vlaneseq
    %v1659 = vshrl.u32 %v1658, 7
    %v1660 = vsub.s32 0, %v1659
    %v1661 = vrot.slane %v1619, %v1660
    %v1662 = vmul.f32 %v51, %v1661
    %v1663 = vmul.f32 %v52, %v1661
    %v1664 = vmul.f32 %v53, %v1661
    %v1665 = vmul.f32 %v54, %v1661
    %1670 = vrot.lane.b32.xlu0 %v1662, 126
    %v1671 = vpop.permute.xlu0 %1670
    %1672 = vrot.lane.b32.xlu0 %v1663, 126
    %v1673 = vpop.permute.xlu0 %1672
    %1674 = vrot.lane.b32.xlu0 %v1664, 126
    %v1675 = vpop.permute.xlu0 %1674
    %1676 = vrot.lane.b32.xlu0 %v1665, 126
    %v1677 = vpop.permute.xlu0 %1676
    %v1682 = vadd.f32 %v1654, %v1671
    %v1683 = vadd.f32 %v1655, %v1673
    %v1684 = vadd.f32 %v1656, %v1675
    %v1685 = vadd.f32 %v1657, %v1677
    %v1686 = vlaneseq
    %v1687 = vshrl.u32 %v1686, 7
    %v1688 = vsub.s32 1, %v1687
    %v1689 = vrot.slane %v1591, %v1688
    %v1690 = vmul.f32 %v51, %v1689
    %v1691 = vmul.f32 %v52, %v1689
    %v1692 = vmul.f32 %v53, %v1689
    %v1693 = vmul.f32 %v54, %v1689
    %v1694 = vadd.f32 %v1682, %v1690
    %v1695 = vadd.f32 %v1683, %v1691
    %v1696 = vadd.f32 %v1684, %v1692
    %v1697 = vadd.f32 %v1685, %v1693
    %v1698 = vlaneseq
    %v1699 = vshrl.u32 %v1698, 7
    %v1700 = vsub.s32 1, %v1699
    %v1701 = vrot.slane %v1619, %v1700
    %v1702 = vmul.f32 %v51, %v1701
    %v1703 = vmul.f32 %v52, %v1701
    %v1704 = vmul.f32 %v53, %v1701
    %v1705 = vmul.f32 %v54, %v1701
    %1710 = vrot.lane.b32.xlu0 %v1702, 125
    %v1711 = vpop.permute.xlu0 %1710
    %1712 = vrot.lane.b32.xlu0 %v1703, 125
    %v1713 = vpop.permute.xlu0 %1712
    %1714 = vrot.lane.b32.xlu0 %v1704, 125
    %v1715 = vpop.permute.xlu0 %1714
    %1716 = vrot.lane.b32.xlu0 %v1705, 125
    %v1717 = vpop.permute.xlu0 %1716
    %v1722 = vadd.f32 %v1694, %v1711
    %v1723 = vadd.f32 %v1695, %v1713
    %v1724 = vadd.f32 %v1696, %v1715
    %v1725 = vadd.f32 %v1697, %v1717
    %v1726 = vlaneseq
    %v1727 = vshrl.u32 %v1726, 7
    %v1728 = vsub.s32 2, %v1727
    %v1729 = vrot.slane %v1591, %v1728
    %v1730 = vmul.f32 %v51, %v1729
    %v1731 = vmul.f32 %v52, %v1729
    %v1732 = vmul.f32 %v53, %v1729
    %v1733 = vmul.f32 %v54, %v1729
    %1738 = vrot.lane.b32.xlu0 %v1730, 127
    %v1739 = vpop.permute.xlu0 %1738
    %1740 = vrot.lane.b32.xlu0 %v1731, 127
    %v1741 = vpop.permute.xlu0 %1740
    %1742 = vrot.lane.b32.xlu0 %v1732, 127
    %v1743 = vpop.permute.xlu0 %1742
    %1744 = vrot.lane.b32.xlu0 %v1733, 127
    %v1745 = vpop.permute.xlu0 %1744
    %v1750 = vadd.f32 %v1722, %v1739
    %v1751 = vadd.f32 %v1723, %v1741
    %v1752 = vadd.f32 %v1724, %v1743
    %v1753 = vadd.f32 %v1725, %v1745
    %v1754 = vlaneseq
    %v1755 = vshrl.u32 %v1754, 7
    %v1756 = vsub.s32 2, %v1755
    %v1757 = vrot.slane %v1619, %v1756
    %v1758 = vmul.f32 %v51, %v1757
    %v1759 = vmul.f32 %v52, %v1757
    %v1760 = vmul.f32 %v53, %v1757
    %v1761 = vmul.f32 %v54, %v1757
    %1766 = vrot.lane.b32.xlu0 %v1758, 124
    %v1767 = vpop.permute.xlu0 %1766
    %1768 = vrot.lane.b32.xlu0 %v1759, 124
    %v1769 = vpop.permute.xlu0 %1768
    %1770 = vrot.lane.b32.xlu0 %v1760, 124
    %v1771 = vpop.permute.xlu0 %1770
    %1772 = vrot.lane.b32.xlu0 %v1761, 124
    %v1773 = vpop.permute.xlu0 %1772
    %v1778 = vadd.f32 %v1750, %v1767
    %v1779 = vadd.f32 %v1751, %v1769
    %v1780 = vadd.f32 %v1752, %v1771
    %v1781 = vadd.f32 %v1753, %v1773
    %v1782 = vlaneseq
    %v1783 = vshrl.u32 %v1782, 7
    %v1784 = vsub.s32 0, %v1783
    %v1785 = vrot.slane %v1624, %v1784
    %v1786 = vmul.f32 %v51, %v1785
    %v1787 = vmul.f32 %v52, %v1785
    %v1788 = vmul.f32 %v53, %v1785
    %v1789 = vmul.f32 %v54, %v1785
    %1794 = vrot.lane.b32.xlu0 %v1786, 123
    %v1795 = vpop.permute.xlu0 %1794
    %1796 = vrot.lane.b32.xlu0 %v1787, 123
    %v1797 = vpop.permute.xlu0 %1796
    %1798 = vrot.lane.b32.xlu0 %v1788, 123
    %v1799 = vpop.permute.xlu0 %1798
    %1800 = vrot.lane.b32.xlu0 %v1789, 123
    %v1801 = vpop.permute.xlu0 %1800
    %v1806 = vadd.f32 %v1778, %v1795
    %v1807 = vadd.f32 %v1779, %v1797
    %v1808 = vadd.f32 %v1780, %v1799
    %v1809 = vadd.f32 %v1781, %v1801
    %v1810 = vlaneseq
    %v1811 = vshrl.u32 %v1810, 7
    %v1812 = vsub.s32 0, %v1811
    %v1813 = vrot.slane %v1629, %v1812
    %v1814 = vmul.f32 %v51, %v1813
    %v1815 = vmul.f32 %v52, %v1813
    %v1816 = vmul.f32 %v53, %v1813
    %v1817 = vmul.f32 %v54, %v1813
    %1822 = vrot.lane.b32.xlu0 %v1814, 122
    %v1823 = vpop.permute.xlu0 %1822
    %1824 = vrot.lane.b32.xlu0 %v1815, 122
    %v1825 = vpop.permute.xlu0 %1824
    %1826 = vrot.lane.b32.xlu0 %v1816, 122
    %v1827 = vpop.permute.xlu0 %1826
    %1828 = vrot.lane.b32.xlu0 %v1817, 122
    %v1829 = vpop.permute.xlu0 %1828
    %v1834 = vadd.f32 %v1806, %v1823
    %v1835 = vadd.f32 %v1807, %v1825
    %v1836 = vadd.f32 %v1808, %v1827
    %v1837 = vadd.f32 %v1809, %v1829
    %vm1838 = vcmp.ge.s32.totalorder %v64, 64
    %vm1839 = vcmp.lt.s32.totalorder %v64, 128
    %vm1840 = vmand %vm1838, %vm1839
    %v1841 = vsel %vm1840, 1, 0
    %vm1842 = vcmp.eq.s32.totalorder %v1841, 1
    %1844 = vset.pattern.permute.xlu0 1
    %1845 = vperm.xlu0 %1844, %v1834
    %v1846 = vpop.permute.xlu0 %1845
    %1849 = vset.pattern.permute.xlu0 1
    %1850 = vperm.xlu0 %1849, %v1835
    %v1851 = vpop.permute.xlu0 %1850
    %1854 = vset.pattern.permute.xlu0 1
    %1855 = vperm.xlu0 %1854, %v1836
    %v1856 = vpop.permute.xlu0 %1855
    %1859 = vset.pattern.permute.xlu0 1
    %1860 = vperm.xlu0 %1859, %v1837
    %v1861 = vpop.permute.xlu0 %1860
    %v1863 = vsel %vm1842, %v1846, %v957
    %v1864 = vsel %vm1842, %v1851, %v958
    %v1865 = vsel %vm1842, %v1856, %v959
    %v1866 = vsel %vm1842, %v1861, %v960
    %s1867 = sld [smem:[#allocation2 + $0x1]]
    %v1868 = vstv %s1867
    %v1869 = vsel %vm1840, %v1868, %v963
    %s1870 = sld [smem:[#allocation2 + $0x81]]
    %v1871 = vstv %s1870
    %v1872 = vsel %vm1840, %v1871, %v966
    %s1873 = sld [smem:[#allocation2 + $0x101]]
    %v1874 = vstv %s1873
    %v1875 = vsel %vm1840, %v1874, %v969
    %s1876 = sld [smem:[#allocation2 + $0x181]]
    %v1877 = vstv %s1876
    %v1878 = vsel %vm1840, %v1877, %v972
    %v1879 = vld [vmem:[%s3] sm:$0xff]
    %v1880 = vmul.f32 %v1869, %v1879
    %v1881 = vld [vmem:[%s4] sm:$0xff]
    %v1882 = vmul.f32 %v1872, %v1881
    %v1883 = vadd.f32 %v1880, %v1882
    %1885 = vset.pattern.permute.xlu0 0
    %1886 = vperm.xlu0 %1885, %v55
    %v1887 = vpop.permute.xlu0 %1886
    %1890 = vset.pattern.permute.xlu0 0
    %1891 = vperm.xlu0 %1890, %v56
    %v1892 = vpop.permute.xlu0 %1891
    %1895 = vset.pattern.permute.xlu0 0
    %1896 = vperm.xlu0 %1895, %v57
    %v1897 = vpop.permute.xlu0 %1896
    %1900 = vset.pattern.permute.xlu0 0
    %1901 = vperm.xlu0 %1900, %v58
    %v1902 = vpop.permute.xlu0 %1901
    %v1904 = vlaneseq
    %v1905 = vshrl.u32 %v1904, 7
    %v1906 = vsub.s32 0, %v1905
    %v1907 = vrot.slane %v1883, %v1906
    %v1908 = vmul.f32 %v1887, %v1907
    %v1909 = vmul.f32 %v1892, %v1907
    %v1910 = vmul.f32 %v1897, %v1907
    %v1911 = vmul.f32 %v1902, %v1907
    %v1912 = vadd.f32 %v1863, %v1908
    %v1913 = vadd.f32 %v1864, %v1909
    %v1914 = vadd.f32 %v1865, %v1910
    %v1915 = vadd.f32 %v1866, %v1911
    %1916 = vset.pattern.permute.xlu0 1
    %1917 = vperm.xlu0 %1916, %v55
    %v1918 = vpop.permute.xlu0 %1917
    %1920 = vset.pattern.permute.xlu0 1
    %1921 = vperm.xlu0 %1920, %v56
    %v1922 = vpop.permute.xlu0 %1921
    %1924 = vset.pattern.permute.xlu0 1
    %1925 = vperm.xlu0 %1924, %v57
    %v1926 = vpop.permute.xlu0 %1925
    %1928 = vset.pattern.permute.xlu0 1
    %1929 = vperm.xlu0 %1928, %v58
    %v1930 = vpop.permute.xlu0 %1929
    %v1932 = vlaneseq
    %v1933 = vshrl.u32 %v1932, 7
    %v1934 = vsub.s32 1, %v1933
    %v1935 = vrot.slane %v1883, %v1934
    %v1936 = vmul.f32 %v1918, %v1935
    %v1937 = vmul.f32 %v1922, %v1935
    %v1938 = vmul.f32 %v1926, %v1935
    %v1939 = vmul.f32 %v1930, %v1935
    %v1940 = vadd.f32 %v1912, %v1936
    %v1941 = vadd.f32 %v1913, %v1937
    %v1942 = vadd.f32 %v1914, %v1938
    %v1943 = vadd.f32 %v1915, %v1939
    %1944 = vset.pattern.permute.xlu0 2
    %1945 = vperm.xlu0 %1944, %v55
    %v1946 = vpop.permute.xlu0 %1945
    %1948 = vset.pattern.permute.xlu0 2
    %1949 = vperm.xlu0 %1948, %v56
    %v1950 = vpop.permute.xlu0 %1949
    %1952 = vset.pattern.permute.xlu0 2
    %1953 = vperm.xlu0 %1952, %v57
    %v1954 = vpop.permute.xlu0 %1953
    %1956 = vset.pattern.permute.xlu0 2
    %1957 = vperm.xlu0 %1956, %v58
    %v1958 = vpop.permute.xlu0 %1957
    %v1960 = vlaneseq
    %v1961 = vshrl.u32 %v1960, 7
    %v1962 = vsub.s32 2, %v1961
    %v1963 = vrot.slane %v1883, %v1962
    %v1964 = vmul.f32 %v1946, %v1963
    %v1965 = vmul.f32 %v1950, %v1963
    %v1966 = vmul.f32 %v1954, %v1963
    %v1967 = vmul.f32 %v1958, %v1963
    %v1968 = vadd.f32 %v1940, %v1964
    %v1969 = vadd.f32 %v1941, %v1965
    %v1970 = vadd.f32 %v1942, %v1966
    %v1971 = vadd.f32 %v1943, %v1967
    %v1972 = vmax.f32 %v1968, 0.0
    %v1973 = vmax.f32 %v1969, 0.0
    %v1974 = vmax.f32 %v1970, 0.0
    %v1975 = vmax.f32 %v1971, 0.0
    %v1976 = vld [vmem:[%s9] sm:$0xff]
    %v1977 = vld [vmem:[%s10] sm:$0xff]
    %1979 = vset.pattern.permute.xlu0 0
    %1980 = vperm.xlu0 %1979, %v1977
    %v1981 = vpop.permute.xlu0 %1980
    %vm1983 = vcmask 261120
    %v1985 = vsel %vm1983, %v1976, 0
    %1987 = vmatprep.subr.mxu0 0.0
    %1988 = vmatpush1.msra.mxu0 0.0
    %1989 = vmatprep.subr.mxu0 0.0
    %1990 = vmatpush1.msra.mxu0 0.0
    %1991 = vmatprep.subr.mxu0 0.0
    %1992 = vmatpush1.msra.mxu0 0.0
    %1993 = vmatprep.subr.mxu0 0.0
    %1994 = vmatpush1.msra.mxu0 0.0
    %1995 = vmatprep.subr.mxu0 0.0
    %1996 = vmatpush1.msra.mxu0 0.0
    %1997 = vmatprep.subr.mxu0 0.0
    %1998 = vmatpush1.msra.mxu0 0.0
    %1999 = vmatprep.subr.mxu0 0.0
    %2000 = vmatpush1.msra.mxu0 0.0
    %2001 = vmatprep.subr.mxu0 0.0
    %2002 = vmatpush1.msra.mxu0 0.0
    %2003 = vmatprep.subr.mxu0 0.0
    %2004 = vmatpush1.msra.mxu0 0.0
    %2005 = vmatprep.subr.mxu0 0.0
    %2006 = vmatpush1.msra.mxu0 0.0
    %2007 = vmatprep.subr.mxu0 0.0
    %2008 = vmatpush1.msra.mxu0 0.0
    %2009 = vmatprep.subr.mxu0 0.0
    %2010 = vmatpush1.msra.mxu0 0.0
    %2011 = vmatprep.subr.mxu0 0.0
    %2012 = vmatpush1.msra.mxu0 %v1975
    %2013 = vmatprep.subr.mxu0 0.0
    %2014 = vmatpush1.msra.mxu0 %v1974
    %2015 = vmatprep.subr.mxu0 0.0
    %2016 = vmatpush1.msra.mxu0 %v1973
    %2017 = vmatprep.subr.mxu0 0.0
    %2018 = vmatpush1.msra.mxu0 %v1972
    %2019 = vmatprep.subr.mxu0 0.0
    %2020 = vmatpush2.msra.mxu0 0.0
    %2021 = vmatprep.subr.mxu0 0.0
    %2022 = vmatpush2.msra.mxu0 0.0
    %2023 = vmatprep.subr.mxu0 0.0
    %2024 = vmatpush2.msra.mxu0 0.0
    %2025 = vmatprep.subr.mxu0 0.0
    %2026 = vmatpush2.msra.mxu0 0.0
    %2027 = vmatprep.subr.mxu0 0.0
    %2028 = vmatpush2.msra.mxu0 0.0
    %2029 = vmatprep.subr.mxu0 0.0
    %2030 = vmatpush2.msra.mxu0 0.0
    %2031 = vmatprep.subr.mxu0 0.0
    %2032 = vmatpush2.msra.mxu0 0.0
    %2033 = vmatprep.subr.mxu0 0.0
    %2034 = vmatpush2.msra.mxu0 0.0
    %2035 = vmatprep.subr.mxu0 0.0
    %2036 = vmatpush2.msra.mxu0 0.0
    %2037 = vmatprep.subr.mxu0 0.0
    %2038 = vmatpush2.msra.mxu0 0.0
    %2039 = vmatprep.subr.mxu0 0.0
    %2040 = vmatpush2.msra.mxu0 0.0
    %2041 = vmatprep.subr.mxu0 0.0
    %2042 = vmatpush2.msra.mxu0 0.0
    %2043 = vmatprep.subr.mxu0 0.0
    %2044 = vmatpush2.msra.mxu0 0.0
    %2045 = vmatprep.subr.mxu0 0.0
    %2046 = vmatpush2.msra.mxu0 0.0
    %2047 = vmatprep.subr.mxu0 0.0
    %2048 = vmatpush2.msra.mxu0 0.0
    %2049 = vmatprep.subr.mxu0 0.0
    %2050 = vmatpush2.msra.mxu0 0.0
    %2051 = vmatprep.mubr.f32.mxu0 0.0
    %2052 = vmatmul.mubr.f32.gmra.mxu0 %v1985
    %v2053 = vpop.f32.mrf.mxu0
    %v2054 = vadd.f32 %v1981, %v2053
    %v2055 = vpop.f32.mrf.mxu0
    %2056 = vdwg.mxu0
    %v2057 = vmul.f32 %v1875, %v1883
    %v2058 = vmul.f32 %v1878, %v2054
    %v2059 = vsub.f32 %v2057, %v2058
    %2060 = vst [vmem:[%s11] sm:$0xff] %v2054
    %s2061 = scalar_lea.vmem %s11, 8
    %2062 = vst [vmem:[%s2061] sm:$0xff] %v2059
    // Predicated region
    $region50: #{ddpm_forward.21} parent=1 // pred_check
      _
    $region51: #{ddpm_forward.21} parent=1 // pred_check_branch
      %2064 = sbr.rel (0) target = $region53
    $region52: #{ddpm_forward.21} parent=1 // pred_region
      _
    $region53: #{ddpm_forward.21} parent=1 // pred_fallthru
      _
    // Predicated region
    $region54: #{ddpm_forward.21} parent=1 // pred_check
      _
    $region55: #{ddpm_forward.21} parent=1 // pred_check_branch
      %2066 = sbr.rel (0) target = $region57
    $region56: #{ddpm_forward.21} parent=1 // pred_region
      _
    $region57: #{ddpm_forward.21} parent=1 // pred_fallthru
      _
    %2067 = vsyncpa [#allocation3], 1

</llo_original>
